<compile_context>
chip_gen: v6e
topology: v6e:2x2x1
jax: 0.10.0
libtpu: 0.0.40
codegen_flags: <defaults>
</compile_context>

<pallas_src>
import functools

import jax
import jax.numpy as jnp
from jax import lax
from jax.experimental import pallas as pl
from jax.experimental.pallas import tpu as pltpu

COMPUTE_DTYPE = jnp.bfloat16   # MXU operand dtype (accumulation stays f32)


# ------------------------------ fused kernel --------------------------------

def _block_kernel(x_ref, wbd_ref, bbd_ref, w2_ref, b2_ref, w3_ref, b3_ref,
                  o_ref, *, W, c1, c3r, c5r, compute_dtype):
    nb, _, HW = x_ref.shape
    f32 = jnp.float32
    NEG_INF = float('-inf')

    # Column-validity masks for horizontally shifted taps (hoisted out of the
    # per-image loop; shared by the conv and pool taps).
    col = lax.broadcasted_iota(jnp.int32, (1, HW), 1) % W
    colmask = {dw: jnp.logical_and(col + dw >= 0, col + dw < W)
               for dw in (-2, -1, 1, 2)}

    def make_tap(a, max_s, fill):
        """Tap factory on a flat (C, H*W) tensor:
        tap(dh, dw)[:, h*W + w] == a[:, (h+dh)*W + (w+dw)], `fill` when the
        shifted position falls outside the image."""
        pad_len = ((max_s + 127) // 128) * 128       # lane-aligned pad blocks
        pad_blk = jnp.full((a.shape[0], pad_len), fill, a.dtype)
        apad = jnp.concatenate([pad_blk, a, pad_blk], axis=1)

        def tap(dh, dw):
            s = dh * W + dw
            b = apad[:, pad_len + s: pad_len + s + HW]
            if dw != 0:        # horizontal shift may wrap across rows -> mask
                b = jnp.where(colmask[dw], b, jnp.full((), fill, a.dtype))
            return b
        return tap

    wbd = wbd_ref[...]         # (cr+cp, 2*cin)  bf16 block-diagonal 1x1 weights
    bbd = bbd_ref[...]         # (cr+cp, 1)      f32
    w2 = w2_ref[...]           # (c3, 9*c3r)     bf16 im2col 3x3 weights
    b2 = b2_ref[...]           # (c3, 1)         f32
    w3 = w3_ref[...]           # (c5, 25*c5r)    bf16 im2col 5x5 weights
    b3 = b3_ref[...]           # (c5, 1)         f32

    for img in range(nb):                              # static unroll
        xi = x_ref[img]                                # (cin, HW) f32

        # --- branch 4 pre-stage: 3x3 / s1 / p1 max-pool (separable) ---------
        tap_x = make_tap(xi, W, NEG_INF)
        rmax = jnp.maximum(jnp.maximum(tap_x(-1, 0), xi), tap_x(1, 0))
        tap_r = make_tap(rmax, 1, NEG_INF)
        mp = jnp.maximum(jnp.maximum(tap_r(0, -1), rmax), tap_r(0, 1))

        # --- branches 1 / 2-reduce / 3-reduce / 4: ONE block-diag 1x1 matmul
        xcat = jnp.concatenate([xi, mp], axis=0).astype(compute_dtype)
        y = jnp.dot(wbd, xcat, preferred_element_type=f32)
        y = jnp.maximum(y + bbd, 0.0)                  # fused bias + ReLU (f32)
        out1 = y[:c1]
        r2 = y[c1:c1 + c3r].astype(compute_dtype)
        r3 = y[c1 + c3r:c1 + c3r + c5r].astype(compute_dtype)
        out4 = y[c1 + c3r + c5r:]

        # --- branch 2: 3x3 conv, pad=1 -- bf16 register im2col + one matmul -
        tap2 = make_tap(r2, W + 1, 0.0)
        patch2 = jnp.concatenate(
            [tap2(dh, dw) for dh in (-1, 0, 1) for dw in (-1, 0, 1)], axis=0)
        out2 = jnp.maximum(
            jnp.dot(w2, patch2, preferred_element_type=f32) + b2, 0.0)

        # --- branch 3: 5x5 conv, pad=2 -- bf16 register im2col + one matmul -
        tap3 = make_tap(r3, 2 * W + 2, 0.0)
        patch3 = jnp.concatenate(
            [tap3(dh, dw) for dh in range(-2, 3) for dw in range(-2, 3)],
            axis=0)
        out3 = jnp.maximum(
            jnp.dot(w3, patch3, preferred_element_type=f32) + b3, 0.0)

        # --- single lane-dense store of all four branches (channel concat) --
        o_ref[img] = jnp.concatenate([out1, out2, out3, out4],
                                     axis=0).astype(o_ref.dtype)


# ------------------------------ wrapper --------------------------------------

def block_forward(x_nchw, p, *, images_per_step=None,
                  compute_dtype=COMPUTE_DTYPE):
    n, cin, H, W = x_nchw.shape
    HW = H * W

    c1 = p['w1'].shape[0]
    c3, c3r = p['w2'].shape[0], p['w2'].shape[1]
    c5, c5r = p['w3'].shape[0], p['w3'].shape[1]
    cp = p['w4'].shape[0]
    cr = c1 + c3r + c5r
    ctot = c1 + c3 + c5 + cp

    # Images per grid step: amortize per-step overhead for larger batches
    # while keeping >= 2 grid steps so "parallel" can use both v7x TCs.
    if images_per_step is None:
        nb = 1
        for cand in (8, 4, 2):
            if n % cand == 0 and n // cand >= 2:
                nb = cand
                break
    else:
        nb = images_per_step
    assert n % nb == 0

    # Block-diagonal fusion of the four 1x1 convs:
    #   rows [0, cr)    : [w1; w2_1; w3_1] applied to x          (left  cin cols)
    #   rows [cr, cr+cp): w4 applied to maxpool(x)               (right cin cols)
    w123 = jnp.concatenate([p['w1'][:, :, 0, 0], p['w2_1'][:, :, 0, 0],
                            p['w3_1'][:, :, 0, 0]], axis=0)           # (cr, cin)
    wbd = jnp.zeros((cr + cp, 2 * cin), jnp.float32)
    wbd = wbd.at[:cr, :cin].set(w123).at[cr:, cin:].set(p['w4'][:, :, 0, 0])
    wbd = wbd.astype(compute_dtype)
    bbd = jnp.concatenate([p['b1'], p['b2_1'], p['b3_1'], p['b4']]
                          ).reshape(cr + cp, 1).astype(jnp.float32)

    # im2col weights: rows = Cout, cols ordered (kh, kw, cin) with cin fastest,
    # matching the tap concatenation order inside the kernel.
    w2 = jnp.transpose(p['w2'], (0, 2, 3, 1)).reshape(
        c3, 9 * c3r).astype(compute_dtype)
    w3 = jnp.transpose(p['w3'], (0, 2, 3, 1)).reshape(
        c5, 25 * c5r).astype(compute_dtype)
    b2 = p['b2'].reshape(c3, 1).astype(jnp.float32)
    b3 = p['b3'].reshape(c5, 1).astype(jnp.float32)

    x = x_nchw.reshape(n, cin, HW).astype(jnp.float32)   # free reshape (NCHW)

    kernel = functools.partial(_block_kernel, W=W, c1=c1, c3r=c3r, c5r=c5r,
                               compute_dtype=compute_dtype)

    out = pl.pallas_call(
        kernel,
        grid=(n // nb,),
        in_specs=[
            pl.BlockSpec((nb, cin, HW), lambda b: (b, 0, 0)),
            pl.BlockSpec((cr + cp, 2 * cin), lambda b: (0, 0)),
            pl.BlockSpec((cr + cp, 1), lambda b: (0, 0)),
            pl.BlockSpec((c3, 9 * c3r), lambda b: (0, 0)),
            pl.BlockSpec((c3, 1), lambda b: (0, 0)),
            pl.BlockSpec((c5, 25 * c5r), lambda b: (0, 0)),
            pl.BlockSpec((c5, 1), lambda b: (0, 0)),
        ],
        out_specs=pl.BlockSpec((nb, ctot, HW), lambda b: (b, 0, 0)),
        out_shape=jax.ShapeDtypeStruct((n, ctot, HW), jnp.float32),
        compiler_params=pltpu.CompilerParams(
            dimension_semantics=("parallel",)),
    )(x, wbd, bbd, w2, b2, w3, b3)

    return out.reshape(n, ctot, H, W)                    # free reshape (NCHW)


# ----------------------------- parameters ------------------------------------

def init_block_params(key, in_c, c1, c3r, c3, c5r, c5, cp):
    """Deterministic synthetic parameters in PyTorch OIHW layout."""
    ks = jax.random.split(key, 12)

    def wconv(k, cout, cin, kh, kw):
        return jax.random.normal(k, (cout, cin, kh, kw), jnp.float32) * 0.1

    def bias(k, cout):
        return jax.random.normal(k, (cout,), jnp.float32) * 0.1

    return dict(
        w1=wconv(ks[0], c1, in_c, 1, 1), b1=bias(ks[1], c1),
        w2_1=wconv(ks[2], c3r, in_c, 1, 1), b2_1=bias(ks[3], c3r),
        w2=wconv(ks[4], c3, c3r, 3, 3), b2=bias(ks[5], c3),      # 3x3, pad=1
        w3_1=wconv(ks[6], c5r, in_c, 1, 1), b3_1=bias(ks[7], c5r),
        w3=wconv(ks[8], c5, c5r, 5, 5), b3=bias(ks[9], c5),      # 5x5, pad=2
        w4=wconv(ks[10], cp, in_c, 1, 1), b4=bias(ks[11], cp),
    )


# --------------------------- pure-JAX reference ------------------------------

def reference_forward(x_nchw, p):
    dn = ('NCHW', 'OIHW', 'NCHW')

    def conv(xx, w, b, pad):
        y = lax.conv_general_dilated(xx, w, (1, 1), [(pad, pad), (pad, pad)],
                                     dimension_numbers=dn)
        return y + b.reshape(1, -1, 1, 1)

    relu = lambda t: jnp.maximum(t, 0.0)
    o1 = conv(x_nchw, p['w1'], p['b1'], 0)
    o2 = conv(relu(conv(x_nchw, p['w2_1'], p['b2_1'], 0)), p['w2'], p['b2'], 1)
    o3 = conv(relu(conv(x_nchw, p['w3_1'], p['b3_1'], 0)), p['w3'], p['b3'], 2)
    mp = lax.reduce_window(x_nchw, -jnp.inf, lax.max, (1, 1, 3, 3),
                           (1, 1, 1, 1), [(0, 0), (0, 0), (1, 1), (1, 1)])
    o4 = conv(mp, p['w4'], p['b4'], 0)
    return relu(jnp.concatenate([o1, o2, o3, o4], axis=1))


# ----------------------------------- main -------------------------------------

if __name__ == "__main__":
    key = jax.random.PRNGKey(0)
    kx, kp = jax.random.split(key)

    # Small synthetic shapes consistent with the Block signature (NCHW input).
    N, Cin, H, W = 2, 16, 16, 16
    C1, C3R, C3, C5R, C5, CP = 8, 8, 16, 4, 8, 8

    x = jax.random.normal(kx, (N, Cin, H, W), jnp.float32)
    params = init_block_params(kp, Cin, C1, C3R, C3, C5R, C5, CP)

    out = jax.jit(block_forward)(x, params)
    out = jax.block_until_ready(out)

    assert out.shape == (N, C1 + C3 + C5 + CP, H, W)
    ref = reference_forward(x, params)
    max_err = float(jnp.max(jnp.abs(out - ref)))
    # bf16 MXU operands (f32 accumulation) -> loosened tolerance vs f32 reference.
    assert jnp.allclose(out, ref, atol=3e-2, rtol=3e-2), (
        f"mismatch vs reference, max|err|={max_err}")

    print("KERNEL_OK")
</pallas_src>

<mosaic_0001>
module attributes {stable_mosaic.version = 11 : i64} {
  func.func @_block_kernel(%arg0: i32, %arg1: memref<1x16x256xf32, #tpu.memory_space<vmem>>, %arg2: memref<28x32xbf16, #tpu.memory_space<vmem>>, %arg3: memref<28x1xf32, #tpu.memory_space<vmem>>, %arg4: memref<16x72xbf16, #tpu.memory_space<vmem>>, %arg5: memref<16x1xf32, #tpu.memory_space<vmem>>, %arg6: memref<8x100xbf16, #tpu.memory_space<vmem>>, %arg7: memref<8x1xf32, #tpu.memory_space<vmem>>, %arg8: memref<1x40x256xf32, #tpu.memory_space<vmem>>) attributes {dimension_semantics = [#tpu.dimension_semantics<parallel>], iteration_bounds = array<i64: 2>, scalar_prefetch = 0 : i64, scratch_operands = 0 : i64, tpu.core_type = #tpu.core_type<tc>, window_params = [{transform_indices = @transform_0, window_bounds = array<i64: 1, 16, 256>}, {pipeline_mode = #tpu.pipeline_mode<synchronous>, transform_indices = @transform_1, window_bounds = array<i64: 28, 32>}, {pipeline_mode = #tpu.pipeline_mode<synchronous>, transform_indices = @transform_2, window_bounds = array<i64: 28, 1>}, {pipeline_mode = #tpu.pipeline_mode<synchronous>, transform_indices = @transform_3, window_bounds = array<i64: 16, 72>}, {pipeline_mode = #tpu.pipeline_mode<synchronous>, transform_indices = @transform_4, window_bounds = array<i64: 16, 1>}, {pipeline_mode = #tpu.pipeline_mode<synchronous>, transform_indices = @transform_5, window_bounds = array<i64: 8, 100>}, {pipeline_mode = #tpu.pipeline_mode<synchronous>, transform_indices = @transform_6, window_bounds = array<i64: 8, 1>}, {transform_indices = @transform_7, window_bounds = array<i64: 1, 40, 256>}]} {
    %0 = tpu.iota {dimensions = array<i32: 1>} : vector<1x256xi32>
    %c16_i32 = arith.constant 16 : i32
    %c0_i32 = arith.constant 0 : i32
    %1 = arith.cmpi eq, %c16_i32, %c0_i32 : i32
    %c1_i32 = arith.constant 1 : i32
    %2 = arith.select %1, %c1_i32, %c16_i32 : i32
    %3 = vector.broadcast %2 : i32 to vector<1x256xi32>
    %4 = arith.remsi %0, %3 : vector<1x256xi32>
    %c0_i32_0 = arith.constant 0 : i32
    %5 = vector.broadcast %c0_i32_0 : i32 to vector<1x256xi32>
    %6 = arith.cmpi ne, %4, %5 : vector<1x256xi32>
    %c0_i32_1 = arith.constant 0 : i32
    %7 = vector.broadcast %c0_i32_1 : i32 to vector<1x256xi32>
    %8 = arith.cmpi slt, %4, %7 : vector<1x256xi32>
    %c0_i32_2 = arith.constant 0 : i32
    %9 = arith.cmpi slt, %2, %c0_i32_2 : i32
    %10 = vector.broadcast %9 : i1 to vector<1x256xi1>
    %11 = vector.broadcast %10 : vector<1x256xi1> to vector<1x256xi1>
    %12 = arith.xori %8, %11 : vector<1x256xi1>
    %13 = arith.andi %12, %6 : vector<1x256xi1>
    %14 = vector.broadcast %2 : i32 to vector<1x256xi32>
    %15 = arith.addi %4, %14 : vector<1x256xi32>
    %16 = arith.select %13, %15, %4 : vector<1x256xi1>, vector<1x256xi32>
    %c-2_i32 = arith.constant -2 : i32
    %17 = vector.broadcast %c-2_i32 : i32 to vector<1x256xi32>
    %18 = arith.addi %16, %17 : vector<1x256xi32>
    %c0_i32_3 = arith.constant 0 : i32
    %19 = vector.broadcast %c0_i32_3 : i32 to vector<1x256xi32>
    %20 = arith.cmpi sge, %18, %19 : vector<1x256xi32>
    %c-2_i32_4 = arith.constant -2 : i32
    %21 = vector.broadcast %c-2_i32_4 : i32 to vector<1x256xi32>
    %22 = arith.addi %16, %21 : vector<1x256xi32>
    %c16_i32_5 = arith.constant 16 : i32
    %23 = vector.broadcast %c16_i32_5 : i32 to vector<1x256xi32>
    %24 = arith.cmpi slt, %22, %23 : vector<1x256xi32>
    %25 = arith.andi %20, %24 : vector<1x256xi1>
    %c-1_i32 = arith.constant -1 : i32
    %26 = vector.broadcast %c-1_i32 : i32 to vector<1x256xi32>
    %27 = arith.addi %16, %26 : vector<1x256xi32>
    %c0_i32_6 = arith.constant 0 : i32
    %28 = vector.broadcast %c0_i32_6 : i32 to vector<1x256xi32>
    %29 = arith.cmpi sge, %27, %28 : vector<1x256xi32>
    %c-1_i32_7 = arith.constant -1 : i32
    %30 = vector.broadcast %c-1_i32_7 : i32 to vector<1x256xi32>
    %31 = arith.addi %16, %30 : vector<1x256xi32>
    %c16_i32_8 = arith.constant 16 : i32
    %32 = vector.broadcast %c16_i32_8 : i32 to vector<1x256xi32>
    %33 = arith.cmpi slt, %31, %32 : vector<1x256xi32>
    %34 = arith.andi %29, %33 : vector<1x256xi1>
    %c1_i32_9 = arith.constant 1 : i32
    %35 = vector.broadcast %c1_i32_9 : i32 to vector<1x256xi32>
    %36 = arith.addi %16, %35 : vector<1x256xi32>
    %c0_i32_10 = arith.constant 0 : i32
    %37 = vector.broadcast %c0_i32_10 : i32 to vector<1x256xi32>
    %38 = arith.cmpi sge, %36, %37 : vector<1x256xi32>
    %c1_i32_11 = arith.constant 1 : i32
    %39 = vector.broadcast %c1_i32_11 : i32 to vector<1x256xi32>
    %40 = arith.addi %16, %39 : vector<1x256xi32>
    %c16_i32_12 = arith.constant 16 : i32
    %41 = vector.broadcast %c16_i32_12 : i32 to vector<1x256xi32>
    %42 = arith.cmpi slt, %40, %41 : vector<1x256xi32>
    %43 = arith.andi %38, %42 : vector<1x256xi1>
    %c2_i32 = arith.constant 2 : i32
    %44 = vector.broadcast %c2_i32 : i32 to vector<1x256xi32>
    %45 = arith.addi %16, %44 : vector<1x256xi32>
    %c0_i32_13 = arith.constant 0 : i32
    %46 = vector.broadcast %c0_i32_13 : i32 to vector<1x256xi32>
    %47 = arith.cmpi sge, %45, %46 : vector<1x256xi32>
    %c2_i32_14 = arith.constant 2 : i32
    %48 = vector.broadcast %c2_i32_14 : i32 to vector<1x256xi32>
    %49 = arith.addi %16, %48 : vector<1x256xi32>
    %c16_i32_15 = arith.constant 16 : i32
    %50 = vector.broadcast %c16_i32_15 : i32 to vector<1x256xi32>
    %51 = arith.cmpi slt, %49, %50 : vector<1x256xi32>
    %52 = arith.andi %47, %51 : vector<1x256xi1>
    %c0 = arith.constant 0 : index
    %c0_16 = arith.constant 0 : index
    %53 = vector.load %arg2[%c0, %c0_16] : memref<28x32xbf16, #tpu.memory_space<vmem>>, vector<28x32xbf16>
    %c0_17 = arith.constant 0 : index
    %c0_18 = arith.constant 0 : index
    %54 = vector.load %arg3[%c0_17, %c0_18] : memref<28x1xf32, #tpu.memory_space<vmem>>, vector<28x1xf32>
    %c0_19 = arith.constant 0 : index
    %c0_20 = arith.constant 0 : index
    %55 = vector.load %arg4[%c0_19, %c0_20] : memref<16x72xbf16, #tpu.memory_space<vmem>>, vector<16x72xbf16>
    %c0_21 = arith.constant 0 : index
    %c0_22 = arith.constant 0 : index
    %56 = vector.load %arg5[%c0_21, %c0_22] : memref<16x1xf32, #tpu.memory_space<vmem>>, vector<16x1xf32>
    %c0_23 = arith.constant 0 : index
    %c0_24 = arith.constant 0 : index
    %57 = vector.load %arg6[%c0_23, %c0_24] : memref<8x100xbf16, #tpu.memory_space<vmem>>, vector<8x100xbf16>
    %c0_25 = arith.constant 0 : index
    %c0_26 = arith.constant 0 : index
    %58 = vector.load %arg7[%c0_25, %c0_26] : memref<8x1xf32, #tpu.memory_space<vmem>>, vector<8x1xf32>
    %c0_27 = arith.constant 0 : index
    %c0_28 = arith.constant 0 : index
    %c0_29 = arith.constant 0 : index
    %59 = vector.load %arg1[%c0_27, %c0_28, %c0_29] : memref<1x16x256xf32, #tpu.memory_space<vmem>>, vector<1x16x256xf32>
    %60 = vector.shape_cast %59 : vector<1x16x256xf32> to vector<16x256xf32>
    %cst = arith.constant 0xFF800000 : f32
    %61 = vector.broadcast %cst : f32 to vector<16x128xf32>
    %62 = tpu.concatenate %61, %60, %61 in 1 : vector<16x128xf32>, vector<16x256xf32>, vector<16x128xf32> -> vector<16x512xf32>
    %63 = vector.extract_strided_slice %62 {offsets = [0, 112], sizes = [16, 256], strides = [1, 1]} : vector<16x512xf32> to vector<16x256xf32>
    %64 = arith.maximumf %63, %60 : vector<16x256xf32>
    %65 = vector.extract_strided_slice %62 {offsets = [0, 144], sizes = [16, 256], strides = [1, 1]} : vector<16x512xf32> to vector<16x256xf32>
    %66 = arith.maximumf %64, %65 : vector<16x256xf32>
    %cst_30 = arith.constant 0xFF800000 : f32
    %67 = vector.broadcast %cst_30 : f32 to vector<16x128xf32>
    %68 = tpu.concatenate %67, %66, %67 in 1 : vector<16x128xf32>, vector<16x256xf32>, vector<16x128xf32> -> vector<16x512xf32>
    %69 = vector.extract_strided_slice %68 {offsets = [0, 127], sizes = [16, 256], strides = [1, 1]} : vector<16x512xf32> to vector<16x256xf32>
    %cst_31 = arith.constant 0xFF800000 : f32
    %70 = vector.shape_cast %34 : vector<1x256xi1> to vector<1x256xi1>
    %71 = vector.broadcast %70 : vector<1x256xi1> to vector<16x256xi1>
    %72 = vector.broadcast %cst_31 : f32 to vector<16x256xf32>
    %73 = arith.select %71, %69, %72 : vector<16x256xi1>, vector<16x256xf32>
    %74 = arith.maximumf %73, %66 : vector<16x256xf32>
    %75 = vector.extract_strided_slice %68 {offsets = [0, 129], sizes = [16, 256], strides = [1, 1]} : vector<16x512xf32> to vector<16x256xf32>
    %cst_32 = arith.constant 0xFF800000 : f32
    %76 = vector.shape_cast %43 : vector<1x256xi1> to vector<1x256xi1>
    %77 = vector.broadcast %76 : vector<1x256xi1> to vector<16x256xi1>
    %78 = vector.broadcast %cst_32 : f32 to vector<16x256xf32>
    %79 = arith.select %77, %75, %78 : vector<16x256xi1>, vector<16x256xf32>
    %80 = arith.maximumf %74, %79 : vector<16x256xf32>
    %81 = tpu.concatenate %60, %80 in 0 : vector<16x256xf32>, vector<16x256xf32> -> vector<32x256xf32>
    %82 = arith.truncf %81 : vector<32x256xf32> to vector<32x256xbf16>
    %cst_33 = arith.constant dense<0.000000e+00> : vector<28x256xf32>
    %83 = tpu.matmul %53, %82, %cst_33 {dimension_numbers = #tpu.dot_dimension_numbers<[1], [0], [0], [1], [0, 0, 1, 1], [], []>} : vector<28x32xbf16>, vector<32x256xbf16>, vector<28x256xf32> -> vector<28x256xf32>
    %84 = vector.broadcast %54 : vector<28x1xf32> to vector<28x256xf32>
    %85 = arith.addf %83, %84 : vector<28x256xf32>
    %cst_34 = arith.constant 0.000000e+00 : f32
    %86 = vector.broadcast %cst_34 : f32 to vector<28x256xf32>
    %87 = arith.maximumf %85, %86 : vector<28x256xf32>
    %88 = vector.extract_strided_slice %87 {offsets = [0, 0], sizes = [8, 256], strides = [1, 1]} : vector<28x256xf32> to vector<8x256xf32>
    %89 = vector.extract_strided_slice %87 {offsets = [8, 0], sizes = [8, 256], strides = [1, 1]} : vector<28x256xf32> to vector<8x256xf32>
    %90 = arith.truncf %89 : vector<8x256xf32> to vector<8x256xbf16>
    %91 = vector.extract_strided_slice %87 {offsets = [16, 0], sizes = [4, 256], strides = [1, 1]} : vector<28x256xf32> to vector<4x256xf32>
    %92 = arith.truncf %91 : vector<4x256xf32> to vector<4x256xbf16>
    %93 = vector.extract_strided_slice %87 {offsets = [20, 0], sizes = [8, 256], strides = [1, 1]} : vector<28x256xf32> to vector<8x256xf32>
    %cst_35 = arith.constant 0.000000e+00 : bf16
    %94 = vector.broadcast %cst_35 : bf16 to vector<8x128xbf16>
    %95 = tpu.concatenate %94, %90, %94 in 1 : vector<8x128xbf16>, vector<8x256xbf16>, vector<8x128xbf16> -> vector<8x512xbf16>
    %96 = vector.extract_strided_slice %95 {offsets = [0, 111], sizes = [8, 256], strides = [1, 1]} : vector<8x512xbf16> to vector<8x256xbf16>
    %cst_36 = arith.constant 0.000000e+00 : bf16
    %97 = vector.shape_cast %34 : vector<1x256xi1> to vector<1x256xi1>
    %98 = vector.broadcast %97 : vector<1x256xi1> to vector<8x256xi1>
    %99 = vector.broadcast %cst_36 : bf16 to vector<8x256xbf16>
    %100 = arith.select %98, %96, %99 : vector<8x256xi1>, vector<8x256xbf16>
    %101 = vector.extract_strided_slice %95 {offsets = [0, 112], sizes = [8, 256], strides = [1, 1]} : vector<8x512xbf16> to vector<8x256xbf16>
    %102 = vector.extract_strided_slice %95 {offsets = [0, 113], sizes = [8, 256], strides = [1, 1]} : vector<8x512xbf16> to vector<8x256xbf16>
    %cst_37 = arith.constant 0.000000e+00 : bf16
    %103 = vector.shape_cast %43 : vector<1x256xi1> to vector<1x256xi1>
    %104 = vector.broadcast %103 : vector<1x256xi1> to vector<8x256xi1>
    %105 = vector.broadcast %cst_37 : bf16 to vector<8x256xbf16>
    %106 = arith.select %104, %102, %105 : vector<8x256xi1>, vector<8x256xbf16>
    %107 = vector.extract_strided_slice %95 {offsets = [0, 127], sizes = [8, 256], strides = [1, 1]} : vector<8x512xbf16> to vector<8x256xbf16>
    %cst_38 = arith.constant 0.000000e+00 : bf16
    %108 = vector.shape_cast %34 : vector<1x256xi1> to vector<1x256xi1>
    %109 = vector.broadcast %108 : vector<1x256xi1> to vector<8x256xi1>
    %110 = vector.broadcast %cst_38 : bf16 to vector<8x256xbf16>
    %111 = arith.select %109, %107, %110 : vector<8x256xi1>, vector<8x256xbf16>
    %112 = vector.extract_strided_slice %95 {offsets = [0, 128], sizes = [8, 256], strides = [1, 1]} : vector<8x512xbf16> to vector<8x256xbf16>
    %113 = vector.extract_strided_slice %95 {offsets = [0, 129], sizes = [8, 256], strides = [1, 1]} : vector<8x512xbf16> to vector<8x256xbf16>
    %cst_39 = arith.constant 0.000000e+00 : bf16
    %114 = vector.shape_cast %43 : vector<1x256xi1> to vector<1x256xi1>
    %115 = vector.broadcast %114 : vector<1x256xi1> to vector<8x256xi1>
    %116 = vector.broadcast %cst_39 : bf16 to vector<8x256xbf16>
    %117 = arith.select %115, %113, %116 : vector<8x256xi1>, vector<8x256xbf16>
    %118 = vector.extract_strided_slice %95 {offsets = [0, 143], sizes = [8, 256], strides = [1, 1]} : vector<8x512xbf16> to vector<8x256xbf16>
    %cst_40 = arith.constant 0.000000e+00 : bf16
    %119 = vector.shape_cast %34 : vector<1x256xi1> to vector<1x256xi1>
    %120 = vector.broadcast %119 : vector<1x256xi1> to vector<8x256xi1>
    %121 = vector.broadcast %cst_40 : bf16 to vector<8x256xbf16>
    %122 = arith.select %120, %118, %121 : vector<8x256xi1>, vector<8x256xbf16>
    %123 = vector.extract_strided_slice %95 {offsets = [0, 144], sizes = [8, 256], strides = [1, 1]} : vector<8x512xbf16> to vector<8x256xbf16>
    %124 = vector.extract_strided_slice %95 {offsets = [0, 145], sizes = [8, 256], strides = [1, 1]} : vector<8x512xbf16> to vector<8x256xbf16>
    %cst_41 = arith.constant 0.000000e+00 : bf16
    %125 = vector.shape_cast %43 : vector<1x256xi1> to vector<1x256xi1>
    %126 = vector.broadcast %125 : vector<1x256xi1> to vector<8x256xi1>
    %127 = vector.broadcast %cst_41 : bf16 to vector<8x256xbf16>
    %128 = arith.select %126, %124, %127 : vector<8x256xi1>, vector<8x256xbf16>
    %129 = tpu.concatenate %100, %101, %106, %111, %112, %117, %122, %123, %128 in 0 : vector<8x256xbf16>, vector<8x256xbf16>, vector<8x256xbf16>, vector<8x256xbf16>, vector<8x256xbf16>, vector<8x256xbf16>, vector<8x256xbf16>, vector<8x256xbf16>, vector<8x256xbf16> -> vector<72x256xbf16>
    %cst_42 = arith.constant dense<0.000000e+00> : vector<16x256xf32>
    %130 = tpu.matmul %55, %129, %cst_42 {dimension_numbers = #tpu.dot_dimension_numbers<[1], [0], [0], [1], [0, 0, 1, 1], [], []>} : vector<16x72xbf16>, vector<72x256xbf16>, vector<16x256xf32> -> vector<16x256xf32>
    %131 = vector.broadcast %56 : vector<16x1xf32> to vector<16x256xf32>
    %132 = arith.addf %130, %131 : vector<16x256xf32>
    %cst_43 = arith.constant 0.000000e+00 : f32
    %133 = vector.broadcast %cst_43 : f32 to vector<16x256xf32>
    %134 = arith.maximumf %132, %133 : vector<16x256xf32>
    %cst_44 = arith.constant 0.000000e+00 : bf16
    %135 = vector.broadcast %cst_44 : bf16 to vector<4x128xbf16>
    %136 = tpu.concatenate %135, %92, %135 in 1 : vector<4x128xbf16>, vector<4x256xbf16>, vector<4x128xbf16> -> vector<4x512xbf16>
    %137 = vector.extract_strided_slice %136 {offsets = [0, 94], sizes = [4, 256], strides = [1, 1]} : vector<4x512xbf16> to vector<4x256xbf16>
    %cst_45 = arith.constant 0.000000e+00 : bf16
    %138 = vector.shape_cast %25 : vector<1x256xi1> to vector<1x256xi1>
    %139 = vector.broadcast %138 : vector<1x256xi1> to vector<4x256xi1>
    %140 = vector.broadcast %cst_45 : bf16 to vector<4x256xbf16>
    %141 = arith.select %139, %137, %140 : vector<4x256xi1>, vector<4x256xbf16>
    %142 = vector.extract_strided_slice %136 {offsets = [0, 95], sizes = [4, 256], strides = [1, 1]} : vector<4x512xbf16> to vector<4x256xbf16>
    %cst_46 = arith.constant 0.000000e+00 : bf16
    %143 = vector.shape_cast %34 : vector<1x256xi1> to vector<1x256xi1>
    %144 = vector.broadcast %143 : vector<1x256xi1> to vector<4x256xi1>
    %145 = vector.broadcast %cst_46 : bf16 to vector<4x256xbf16>
    %146 = arith.select %144, %142, %145 : vector<4x256xi1>, vector<4x256xbf16>
    %147 = vector.extract_strided_slice %136 {offsets = [0, 96], sizes = [4, 256], strides = [1, 1]} : vector<4x512xbf16> to vector<4x256xbf16>
    %148 = vector.extract_strided_slice %136 {offsets = [0, 97], sizes = [4, 256], strides = [1, 1]} : vector<4x512xbf16> to vector<4x256xbf16>
    %cst_47 = arith.constant 0.000000e+00 : bf16
    %149 = vector.shape_cast %43 : vector<1x256xi1> to vector<1x256xi1>
    %150 = vector.broadcast %149 : vector<1x256xi1> to vector<4x256xi1>
    %151 = vector.broadcast %cst_47 : bf16 to vector<4x256xbf16>
    %152 = arith.select %150, %148, %151 : vector<4x256xi1>, vector<4x256xbf16>
    %153 = vector.extract_strided_slice %136 {offsets = [0, 98], sizes = [4, 256], strides = [1, 1]} : vector<4x512xbf16> to vector<4x256xbf16>
    %cst_48 = arith.constant 0.000000e+00 : bf16
    %154 = vector.shape_cast %52 : vector<1x256xi1> to vector<1x256xi1>
    %155 = vector.broadcast %154 : vector<1x256xi1> to vector<4x256xi1>
    %156 = vector.broadcast %cst_48 : bf16 to vector<4x256xbf16>
    %157 = arith.select %155, %153, %156 : vector<4x256xi1>, vector<4x256xbf16>
    %158 = vector.extract_strided_slice %136 {offsets = [0, 110], sizes = [4, 256], strides = [1, 1]} : vector<4x512xbf16> to vector<4x256xbf16>
    %cst_49 = arith.constant 0.000000e+00 : bf16
    %159 = vector.shape_cast %25 : vector<1x256xi1> to vector<1x256xi1>
    %160 = vector.broadcast %159 : vector<1x256xi1> to vector<4x256xi1>
    %161 = vector.broadcast %cst_49 : bf16 to vector<4x256xbf16>
    %162 = arith.select %160, %158, %161 : vector<4x256xi1>, vector<4x256xbf16>
    %163 = vector.extract_strided_slice %136 {offsets = [0, 111], sizes = [4, 256], strides = [1, 1]} : vector<4x512xbf16> to vector<4x256xbf16>
    %cst_50 = arith.constant 0.000000e+00 : bf16
    %164 = vector.shape_cast %34 : vector<1x256xi1> to vector<1x256xi1>
    %165 = vector.broadcast %164 : vector<1x256xi1> to vector<4x256xi1>
    %166 = vector.broadcast %cst_50 : bf16 to vector<4x256xbf16>
    %167 = arith.select %165, %163, %166 : vector<4x256xi1>, vector<4x256xbf16>
    %168 = vector.extract_strided_slice %136 {offsets = [0, 112], sizes = [4, 256], strides = [1, 1]} : vector<4x512xbf16> to vector<4x256xbf16>
    %169 = vector.extract_strided_slice %136 {offsets = [0, 113], sizes = [4, 256], strides = [1, 1]} : vector<4x512xbf16> to vector<4x256xbf16>
    %cst_51 = arith.constant 0.000000e+00 : bf16
    %170 = vector.shape_cast %43 : vector<1x256xi1> to vector<1x256xi1>
    %171 = vector.broadcast %170 : vector<1x256xi1> to vector<4x256xi1>
    %172 = vector.broadcast %cst_51 : bf16 to vector<4x256xbf16>
    %173 = arith.select %171, %169, %172 : vector<4x256xi1>, vector<4x256xbf16>
    %174 = vector.extract_strided_slice %136 {offsets = [0, 114], sizes = [4, 256], strides = [1, 1]} : vector<4x512xbf16> to vector<4x256xbf16>
    %cst_52 = arith.constant 0.000000e+00 : bf16
    %175 = vector.shape_cast %52 : vector<1x256xi1> to vector<1x256xi1>
    %176 = vector.broadcast %175 : vector<1x256xi1> to vector<4x256xi1>
    %177 = vector.broadcast %cst_52 : bf16 to vector<4x256xbf16>
    %178 = arith.select %176, %174, %177 : vector<4x256xi1>, vector<4x256xbf16>
    %179 = vector.extract_strided_slice %136 {offsets = [0, 126], sizes = [4, 256], strides = [1, 1]} : vector<4x512xbf16> to vector<4x256xbf16>
    %cst_53 = arith.constant 0.000000e+00 : bf16
    %180 = vector.shape_cast %25 : vector<1x256xi1> to vector<1x256xi1>
    %181 = vector.broadcast %180 : vector<1x256xi1> to vector<4x256xi1>
    %182 = vector.broadcast %cst_53 : bf16 to vector<4x256xbf16>
    %183 = arith.select %181, %179, %182 : vector<4x256xi1>, vector<4x256xbf16>
    %184 = vector.extract_strided_slice %136 {offsets = [0, 127], sizes = [4, 256], strides = [1, 1]} : vector<4x512xbf16> to vector<4x256xbf16>
    %cst_54 = arith.constant 0.000000e+00 : bf16
    %185 = vector.shape_cast %34 : vector<1x256xi1> to vector<1x256xi1>
    %186 = vector.broadcast %185 : vector<1x256xi1> to vector<4x256xi1>
    %187 = vector.broadcast %cst_54 : bf16 to vector<4x256xbf16>
    %188 = arith.select %186, %184, %187 : vector<4x256xi1>, vector<4x256xbf16>
    %189 = vector.extract_strided_slice %136 {offsets = [0, 128], sizes = [4, 256], strides = [1, 1]} : vector<4x512xbf16> to vector<4x256xbf16>
    %190 = vector.extract_strided_slice %136 {offsets = [0, 129], sizes = [4, 256], strides = [1, 1]} : vector<4x512xbf16> to vector<4x256xbf16>
    %cst_55 = arith.constant 0.000000e+00 : bf16
    %191 = vector.shape_cast %43 : vector<1x256xi1> to vector<1x256xi1>
    %192 = vector.broadcast %191 : vector<1x256xi1> to vector<4x256xi1>
    %193 = vector.broadcast %cst_55 : bf16 to vector<4x256xbf16>
    %194 = arith.select %192, %190, %193 : vector<4x256xi1>, vector<4x256xbf16>
    %195 = vector.extract_strided_slice %136 {offsets = [0, 130], sizes = [4, 256], strides = [1, 1]} : vector<4x512xbf16> to vector<4x256xbf16>
    %cst_56 = arith.constant 0.000000e+00 : bf16
    %196 = vector.shape_cast %52 : vector<1x256xi1> to vector<1x256xi1>
    %197 = vector.broadcast %196 : vector<1x256xi1> to vector<4x256xi1>
    %198 = vector.broadcast %cst_56 : bf16 to vector<4x256xbf16>
    %199 = arith.select %197, %195, %198 : vector<4x256xi1>, vector<4x256xbf16>
    %200 = vector.extract_strided_slice %136 {offsets = [0, 142], sizes = [4, 256], strides = [1, 1]} : vector<4x512xbf16> to vector<4x256xbf16>
    %cst_57 = arith.constant 0.000000e+00 : bf16
    %201 = vector.shape_cast %25 : vector<1x256xi1> to vector<1x256xi1>
    %202 = vector.broadcast %201 : vector<1x256xi1> to vector<4x256xi1>
    %203 = vector.broadcast %cst_57 : bf16 to vector<4x256xbf16>
    %204 = arith.select %202, %200, %203 : vector<4x256xi1>, vector<4x256xbf16>
    %205 = vector.extract_strided_slice %136 {offsets = [0, 143], sizes = [4, 256], strides = [1, 1]} : vector<4x512xbf16> to vector<4x256xbf16>
    %cst_58 = arith.constant 0.000000e+00 : bf16
    %206 = vector.shape_cast %34 : vector<1x256xi1> to vector<1x256xi1>
    %207 = vector.broadcast %206 : vector<1x256xi1> to vector<4x256xi1>
    %208 = vector.broadcast %cst_58 : bf16 to vector<4x256xbf16>
    %209 = arith.select %207, %205, %208 : vector<4x256xi1>, vector<4x256xbf16>
    %210 = vector.extract_strided_slice %136 {offsets = [0, 144], sizes = [4, 256], strides = [1, 1]} : vector<4x512xbf16> to vector<4x256xbf16>
    %211 = vector.extract_strided_slice %136 {offsets = [0, 145], sizes = [4, 256], strides = [1, 1]} : vector<4x512xbf16> to vector<4x256xbf16>
    %cst_59 = arith.constant 0.000000e+00 : bf16
    %212 = vector.shape_cast %43 : vector<1x256xi1> to vector<1x256xi1>
    %213 = vector.broadcast %212 : vector<1x256xi1> to vector<4x256xi1>
    %214 = vector.broadcast %cst_59 : bf16 to vector<4x256xbf16>
    %215 = arith.select %213, %211, %214 : vector<4x256xi1>, vector<4x256xbf16>
    %216 = vector.extract_strided_slice %136 {offsets = [0, 146], sizes = [4, 256], strides = [1, 1]} : vector<4x512xbf16> to vector<4x256xbf16>
    %cst_60 = arith.constant 0.000000e+00 : bf16
    %217 = vector.shape_cast %52 : vector<1x256xi1> to vector<1x256xi1>
    %218 = vector.broadcast %217 : vector<1x256xi1> to vector<4x256xi1>
    %219 = vector.broadcast %cst_60 : bf16 to vector<4x256xbf16>
    %220 = arith.select %218, %216, %219 : vector<4x256xi1>, vector<4x256xbf16>
    %221 = vector.extract_strided_slice %136 {offsets = [0, 158], sizes = [4, 256], strides = [1, 1]} : vector<4x512xbf16> to vector<4x256xbf16>
    %cst_61 = arith.constant 0.000000e+00 : bf16
    %222 = vector.shape_cast %25 : vector<1x256xi1> to vector<1x256xi1>
    %223 = vector.broadcast %222 : vector<1x256xi1> to vector<4x256xi1>
    %224 = vector.broadcast %cst_61 : bf16 to vector<4x256xbf16>
    %225 = arith.select %223, %221, %224 : vector<4x256xi1>, vector<4x256xbf16>
    %226 = vector.extract_strided_slice %136 {offsets = [0, 159], sizes = [4, 256], strides = [1, 1]} : vector<4x512xbf16> to vector<4x256xbf16>
    %cst_62 = arith.constant 0.000000e+00 : bf16
    %227 = vector.shape_cast %34 : vector<1x256xi1> to vector<1x256xi1>
    %228 = vector.broadcast %227 : vector<1x256xi1> to vector<4x256xi1>
    %229 = vector.broadcast %cst_62 : bf16 to vector<4x256xbf16>
    %230 = arith.select %228, %226, %229 : vector<4x256xi1>, vector<4x256xbf16>
    %231 = vector.extract_strided_slice %136 {offsets = [0, 160], sizes = [4, 256], strides = [1, 1]} : vector<4x512xbf16> to vector<4x256xbf16>
    %232 = vector.extract_strided_slice %136 {offsets = [0, 161], sizes = [4, 256], strides = [1, 1]} : vector<4x512xbf16> to vector<4x256xbf16>
    %cst_63 = arith.constant 0.000000e+00 : bf16
    %233 = vector.shape_cast %43 : vector<1x256xi1> to vector<1x256xi1>
    %234 = vector.broadcast %233 : vector<1x256xi1> to vector<4x256xi1>
    %235 = vector.broadcast %cst_63 : bf16 to vector<4x256xbf16>
    %236 = arith.select %234, %232, %235 : vector<4x256xi1>, vector<4x256xbf16>
    %237 = vector.extract_strided_slice %136 {offsets = [0, 162], sizes = [4, 256], strides = [1, 1]} : vector<4x512xbf16> to vector<4x256xbf16>
    %cst_64 = arith.constant 0.000000e+00 : bf16
    %238 = vector.shape_cast %52 : vector<1x256xi1> to vector<1x256xi1>
    %239 = vector.broadcast %238 : vector<1x256xi1> to vector<4x256xi1>
    %240 = vector.broadcast %cst_64 : bf16 to vector<4x256xbf16>
    %241 = arith.select %239, %237, %240 : vector<4x256xi1>, vector<4x256xbf16>
    %242 = tpu.concatenate %141, %146, %147, %152, %157, %162, %167, %168, %173, %178, %183, %188, %189, %194, %199, %204 in 0 : vector<4x256xbf16>, vector<4x256xbf16>, vector<4x256xbf16>, vector<4x256xbf16>, vector<4x256xbf16>, vector<4x256xbf16>, vector<4x256xbf16>, vector<4x256xbf16>, vector<4x256xbf16>, vector<4x256xbf16>, vector<4x256xbf16>, vector<4x256xbf16>, vector<4x256xbf16>, vector<4x256xbf16>, vector<4x256xbf16>, vector<4x256xbf16> -> vector<64x256xbf16>
    %243 = tpu.concatenate %209, %210, %215, %220, %225, %230, %231, %236, %241 in 0 : vector<4x256xbf16>, vector<4x256xbf16>, vector<4x256xbf16>, vector<4x256xbf16>, vector<4x256xbf16>, vector<4x256xbf16>, vector<4x256xbf16>, vector<4x256xbf16>, vector<4x256xbf16> -> vector<36x256xbf16>
    %244 = tpu.concatenate %242, %243 in 0 : vector<64x256xbf16>, vector<36x256xbf16> -> vector<100x256xbf16>
    %cst_65 = arith.constant dense<0.000000e+00> : vector<8x256xf32>
    %245 = tpu.matmul %57, %244, %cst_65 {dimension_numbers = #tpu.dot_dimension_numbers<[1], [0], [0], [1], [0, 0, 1, 1], [], []>} : vector<8x100xbf16>, vector<100x256xbf16>, vector<8x256xf32> -> vector<8x256xf32>
    %246 = vector.broadcast %58 : vector<8x1xf32> to vector<8x256xf32>
    %247 = arith.addf %245, %246 : vector<8x256xf32>
    %cst_66 = arith.constant 0.000000e+00 : f32
    %248 = vector.broadcast %cst_66 : f32 to vector<8x256xf32>
    %249 = arith.maximumf %247, %248 : vector<8x256xf32>
    %250 = tpu.concatenate %88, %134, %249, %93 in 0 : vector<8x256xf32>, vector<16x256xf32>, vector<8x256xf32>, vector<8x256xf32> -> vector<40x256xf32>
    %c0_67 = arith.constant 0 : index
    %c0_68 = arith.constant 0 : index
    %c0_69 = arith.constant 0 : index
    %251 = vector.load %arg8[%c0_67, %c0_68, %c0_69] : memref<1x40x256xf32, #tpu.memory_space<vmem>>, vector<1x40x256xf32>
    %252 = vector.shape_cast %251 : vector<1x40x256xf32> to vector<40x256xf32>
    %253 = vector.shape_cast %250 : vector<40x256xf32> to vector<1x40x256xf32>
    tpu.vector_store %arg8[%c0_67, %c0_68, %c0_69], %253 {strides = array<i32>} : memref<1x40x256xf32, #tpu.memory_space<vmem>>, vector<1x40x256xf32>,
    return
  }
  func.func @transform_0(%arg0: i32) -> (i32, i32, i32) {
    %c0_i32 = arith.constant 0 : i32
    %c0_i32_0 = arith.constant 0 : i32
    %c0_i32_1 = arith.constant 0 : i32
    return %arg0, %c0_i32, %c0_i32_0 : i32, i32, i32
  }
  func.func @transform_1(%arg0: i32) -> (i32, i32) {
    %c0_i32 = arith.constant 0 : i32
    %c0_i32_0 = arith.constant 0 : i32
    %c0_i32_1 = arith.constant 0 : i32
    return %c0_i32, %c0_i32_0 : i32, i32
  }
  func.func @transform_2(%arg0: i32) -> (i32, i32) {
    %c0_i32 = arith.constant 0 : i32
    %c0_i32_0 = arith.constant 0 : i32
    %c0_i32_1 = arith.constant 0 : i32
    return %c0_i32, %c0_i32_0 : i32, i32
  }
  func.func @transform_3(%arg0: i32) -> (i32, i32) {
    %c0_i32 = arith.constant 0 : i32
    %c0_i32_0 = arith.constant 0 : i32
    %c0_i32_1 = arith.constant 0 : i32
    return %c0_i32, %c0_i32_0 : i32, i32
  }
  func.func @transform_4(%arg0: i32) -> (i32, i32) {
    %c0_i32 = arith.constant 0 : i32
    %c0_i32_0 = arith.constant 0 : i32
    %c0_i32_1 = arith.constant 0 : i32
    return %c0_i32, %c0_i32_0 : i32, i32
  }
  func.func @transform_5(%arg0: i32) -> (i32, i32) {
    %c0_i32 = arith.constant 0 : i32
    %c0_i32_0 = arith.constant 0 : i32
    %c0_i32_1 = arith.constant 0 : i32
    return %c0_i32, %c0_i32_0 : i32, i32
  }
  func.func @transform_6(%arg0: i32) -> (i32, i32) {
    %c0_i32 = arith.constant 0 : i32
    %c0_i32_0 = arith.constant 0 : i32
    %c0_i32_1 = arith.constant 0 : i32
    return %c0_i32, %c0_i32_0 : i32, i32
  }
  func.func @transform_7(%arg0: i32) -> (i32, i32, i32) {
    %c0_i32 = arith.constant 0 : i32
    %c0_i32_0 = arith.constant 0 : i32
    %c0_i32_1 = arith.constant 0 : i32
    return %arg0, %c0_i32, %c0_i32_0 : i32, i32, i32
  }
}

</mosaic_0001>

<llo_original>
// kernel: block_forward.1
$region0: #{block_forward.1}
  #allocation0 [shape = 'u32[]', space=smem, size = 0x4, offset = 0x4, fixed_abs, tag = 'smem constant byte address 0x4 - core index']
  #allocation1 [shape = 'u32[144,128]{1,0:T(1,128)}', space=vmem, size = 0x12000, scoped, tag = 'internal scratch']
  %s0 = inlined_call_operand.vmem [shape: f32[2,16,256], index: 0, kind: input, shape index: {}]
  %s1 = inlined_call_operand.vmem [shape: bf16[28,32], index: 1, kind: input, shape index: {}]
  %s2 = inlined_call_operand.vmem [shape: f32[28,1], index: 2, kind: input, shape index: {}]
  %s3 = inlined_call_operand.vmem [shape: bf16[16,72], index: 3, kind: input, shape index: {}]
  %s4 = inlined_call_operand.vmem [shape: f32[16,1], index: 4, kind: input, shape index: {}]
  %s5 = inlined_call_operand.vmem [shape: bf16[8,100], index: 5, kind: input, shape index: {}]
  %s6 = inlined_call_operand.vmem [shape: f32[8,1], index: 6, kind: input, shape index: {}]
  %s7 = inlined_call_operand.vmem [shape: f32[2,40,256], index: 7, kind: output, shape index: {}]
  %s8 = sld [smem:[#allocation0]]
  $region61: #{block_forward.1} parent=0
    _
  %s10 = ssub.s32 1, %s8
  %s11 = scalar_select 0, %s10, %s8
  loop: start=0, step=1, limit=4
  $region2: #{block_forward.1} parent=0 // loop_pre_header
    _
  $region3: #{block_forward.1} parent=0 // loop_header
    %s13 = sphi 0, %s17
    %p14 = scmp.ge.s32.totalorder %s13, 4
    %s23 = sphi 0, %s25
    %s26 = sphi 0, %s23
    %s27 = sphi 0, %s26
    %s43 = sphi 0, %s27
    %s47 = sphi 0, %s47
    %s49 = sphi 0, %s47
    %s50 = sphi 0, %s49
    %s64 = sphi 0, %s50
    %s68 = sphi 0, %s68
    %s70 = sphi 0, %s68
    %s71 = sphi 0, %s70
    %s85 = sphi 0, %s71
    %s89 = sphi 0, %s89
    %s91 = sphi 0, %s89
    %s92 = sphi 0, %s91
    %s106 = sphi 0, %s92
    %s110 = sphi 0, %s110
    %s112 = sphi 0, %s110
    %s113 = sphi 0, %s112
    %s127 = sphi 0, %s113
    %s131 = sphi 0, %s131
    %s133 = sphi 0, %s131
    %s134 = sphi 0, %s133
    %s148 = sphi 0, %s134
    %s152 = sphi 0, %s152
    %s154 = sphi 0, %s152
    %s155 = sphi 0, %s154
    %s169 = sphi 0, %s155
    %s175 = sphi 0, %s177
    %s178 = sphi 0, %s175
    %s179 = sphi 0, %s178
    %s195 = sphi 0, %s179
  $region4: #{block_forward.1} parent=0 // loop_header_branch
    %16 = sbr.rel (%p14) target = $region8
  $region5: #{block_forward.1} parent=0 // loop_body
    %s18 = ssub.s32 %s13, 1
    %s19 = ssub.s32 %s13, 2
    %s20 = sadd.s32 %s13, 1
    %s21 = ssub.s32 %s13, %s20
    %p22 = scmp.eq.s32.totalorder %s21, 0
    %s24 = sadd.s32 %s23, 1
    %s25 = scalar_select %p22, %s23, %s24
    %p28 = pneg %p22
    %p29 = scmp.eq.s32.totalorder %s13, 1
    %p30 = por %p28, %p29
    %p31 = scmp.ne.s32.totalorder %s23, %s26
    %p32 = scmp.eq.s32.totalorder %s13, 0
    %p33 = por %p31, %p32
    %p34 = scmp.ne.s32.totalorder %s23, %s26
    %p35 = scmp.eq.s32.totalorder %s18, 1
    %p36 = por %p34, %p35
    %p37 = scmp.ne.s32.totalorder %s26, %s27
    %p38 = scmp.eq.s32.totalorder %s18, 0
    %p39 = por %p37, %p38
    %p40 = scmp.ne.s32.totalorder %s26, %s27
    %p41 = scmp.eq.s32.totalorder %s19, 1
    %p42 = por %p40, %p41
    %p44 = scmp.ne.s32.totalorder %s27, %s43
    %p45 = scmp.eq.s32.totalorder %s19, 0
    %p46 = por %p44, %p45
    %s48 = sadd.s32 %s47, 1
    %p51 = scmp.eq.s32.totalorder %s13, 1
    %p52 = scmp.ne.s32.totalorder %s47, %s49
    %p53 = scmp.eq.s32.totalorder %s13, 0
    %p54 = por %p52, %p53
    %p55 = scmp.ne.s32.totalorder %s47, %s49
    %p56 = scmp.eq.s32.totalorder %s18, 1
    %p57 = por %p55, %p56
    %p58 = scmp.ne.s32.totalorder %s49, %s50
    %p59 = scmp.eq.s32.totalorder %s18, 0
    %p60 = por %p58, %p59
    %p61 = scmp.ne.s32.totalorder %s49, %s50
    %p62 = scmp.eq.s32.totalorder %s19, 1
    %p63 = por %p61, %p62
    %p65 = scmp.ne.s32.totalorder %s50, %s64
    %p66 = scmp.eq.s32.totalorder %s19, 0
    %p67 = por %p65, %p66
    %s69 = sadd.s32 %s68, 1
    %p72 = scmp.eq.s32.totalorder %s13, 1
    %p73 = scmp.ne.s32.totalorder %s68, %s70
    %p74 = scmp.eq.s32.totalorder %s13, 0
    %p75 = por %p73, %p74
    %p76 = scmp.ne.s32.totalorder %s68, %s70
    %p77 = scmp.eq.s32.totalorder %s18, 1
    %p78 = por %p76, %p77
    %p79 = scmp.ne.s32.totalorder %s70, %s71
    %p80 = scmp.eq.s32.totalorder %s18, 0
    %p81 = por %p79, %p80
    %p82 = scmp.ne.s32.totalorder %s70, %s71
    %p83 = scmp.eq.s32.totalorder %s19, 1
    %p84 = por %p82, %p83
    %p86 = scmp.ne.s32.totalorder %s71, %s85
    %p87 = scmp.eq.s32.totalorder %s19, 0
    %p88 = por %p86, %p87
    %s90 = sadd.s32 %s89, 1
    %p93 = scmp.eq.s32.totalorder %s13, 1
    %p94 = scmp.ne.s32.totalorder %s89, %s91
    %p95 = scmp.eq.s32.totalorder %s13, 0
    %p96 = por %p94, %p95
    %p97 = scmp.ne.s32.totalorder %s89, %s91
    %p98 = scmp.eq.s32.totalorder %s18, 1
    %p99 = por %p97, %p98
    %p100 = scmp.ne.s32.totalorder %s91, %s92
    %p101 = scmp.eq.s32.totalorder %s18, 0
    %p102 = por %p100, %p101
    %p103 = scmp.ne.s32.totalorder %s91, %s92
    %p104 = scmp.eq.s32.totalorder %s19, 1
    %p105 = por %p103, %p104
    %p107 = scmp.ne.s32.totalorder %s92, %s106
    %p108 = scmp.eq.s32.totalorder %s19, 0
    %p109 = por %p107, %p108
    %s111 = sadd.s32 %s110, 1
    %p114 = scmp.eq.s32.totalorder %s13, 1
    %p115 = scmp.ne.s32.totalorder %s110, %s112
    %p116 = scmp.eq.s32.totalorder %s13, 0
    %p117 = por %p115, %p116
    %p118 = scmp.ne.s32.totalorder %s110, %s112
    %p119 = scmp.eq.s32.totalorder %s18, 1
    %p120 = por %p118, %p119
    %p121 = scmp.ne.s32.totalorder %s112, %s113
    %p122 = scmp.eq.s32.totalorder %s18, 0
    %p123 = por %p121, %p122
    %p124 = scmp.ne.s32.totalorder %s112, %s113
    %p125 = scmp.eq.s32.totalorder %s19, 1
    %p126 = por %p124, %p125
    %p128 = scmp.ne.s32.totalorder %s113, %s127
    %p129 = scmp.eq.s32.totalorder %s19, 0
    %p130 = por %p128, %p129
    %s132 = sadd.s32 %s131, 1
    %p135 = scmp.eq.s32.totalorder %s13, 1
    %p136 = scmp.ne.s32.totalorder %s131, %s133
    %p137 = scmp.eq.s32.totalorder %s13, 0
    %p138 = por %p136, %p137
    %p139 = scmp.ne.s32.totalorder %s131, %s133
    %p140 = scmp.eq.s32.totalorder %s18, 1
    %p141 = por %p139, %p140
    %p142 = scmp.ne.s32.totalorder %s133, %s134
    %p143 = scmp.eq.s32.totalorder %s18, 0
    %p144 = por %p142, %p143
    %p145 = scmp.ne.s32.totalorder %s133, %s134
    %p146 = scmp.eq.s32.totalorder %s19, 1
    %p147 = por %p145, %p146
    %p149 = scmp.ne.s32.totalorder %s134, %s148
    %p150 = scmp.eq.s32.totalorder %s19, 0
    %p151 = por %p149, %p150
    %s153 = sadd.s32 %s152, 1
    %p156 = scmp.eq.s32.totalorder %s13, 1
    %p157 = scmp.ne.s32.totalorder %s152, %s154
    %p158 = scmp.eq.s32.totalorder %s13, 0
    %p159 = por %p157, %p158
    %p160 = scmp.ne.s32.totalorder %s152, %s154
    %p161 = scmp.eq.s32.totalorder %s18, 1
    %p162 = por %p160, %p161
    %p163 = scmp.ne.s32.totalorder %s154, %s155
    %p164 = scmp.eq.s32.totalorder %s18, 0
    %p165 = por %p163, %p164
    %p166 = scmp.ne.s32.totalorder %s154, %s155
    %p167 = scmp.eq.s32.totalorder %s19, 1
    %p168 = por %p166, %p167
    %p170 = scmp.ne.s32.totalorder %s155, %s169
    %p171 = scmp.eq.s32.totalorder %s19, 0
    %p172 = por %p170, %p171
    %s173 = ssub.s32 %s13, %s20
    %p174 = scmp.eq.s32.totalorder %s173, 0
    %s176 = sadd.s32 %s175, 1
    %s177 = scalar_select %p174, %s175, %s176
    %p180 = pneg %p174
    %p181 = scmp.eq.s32.totalorder %s13, 1
    %p182 = por %p180, %p181
    %p183 = scmp.ne.s32.totalorder %s175, %s178
    %p184 = scmp.eq.s32.totalorder %s13, 0
    %p185 = por %p183, %p184
    %p186 = scmp.ne.s32.totalorder %s175, %s178
    %p187 = scmp.eq.s32.totalorder %s18, 1
    %p188 = por %p186, %p187
    %p189 = scmp.ne.s32.totalorder %s178, %s179
    %p190 = scmp.eq.s32.totalorder %s18, 0
    %p191 = por %p189, %p190
    %p192 = scmp.ne.s32.totalorder %s178, %s179
    %p193 = scmp.eq.s32.totalorder %s19, 1
    %p194 = por %p192, %p193
    %p196 = scmp.ne.s32.totalorder %s179, %s195
    %p197 = scmp.eq.s32.totalorder %s19, 0
    %p198 = por %p196, %p197
    %p199 = scmp.le.s32.totalorder 1, %s13
    %p200 = scmp.lt.s32.totalorder %s13, 3
    %p201 = pnand %p199, %p200
    %p202 = pneg %p201
    // Predicated region
    $region9: #{block_forward.1} parent=5 // pred_check
      _
    $region10: #{block_forward.1} parent=5 // pred_check_branch
      %204 = sbr.rel (%p201) target = $region12
    $region11: #{block_forward.1} parent=5 // pred_region
      %s205 = ssub.s32 %s13, 1
      // Predicated region
      $region13: #{block_forward.1} parent=11 // pred_check
        %p206 = pneg %p60
      $region14: #{block_forward.1} parent=11 // pred_check_branch
        %208 = sbr.rel (%p206) target = $region16
      $region15: #{block_forward.1} parent=11 // pred_region
        _
      $region16: #{block_forward.1} parent=11 // pred_fallthru
        _
      // Predicated region
      $region17: #{block_forward.1} parent=11 // pred_check
        %p209 = pneg %p81
      $region18: #{block_forward.1} parent=11 // pred_check_branch
        %211 = sbr.rel (%p209) target = $region20
      $region19: #{block_forward.1} parent=11 // pred_region
        _
      $region20: #{block_forward.1} parent=11 // pred_fallthru
        _
      // Predicated region
      $region21: #{block_forward.1} parent=11 // pred_check
        %p212 = pneg %p102
      $region22: #{block_forward.1} parent=11 // pred_check_branch
        %214 = sbr.rel (%p212) target = $region24
      $region23: #{block_forward.1} parent=11 // pred_region
        _
      $region24: #{block_forward.1} parent=11 // pred_fallthru
        _
      // Predicated region
      $region25: #{block_forward.1} parent=11 // pred_check
        %p215 = pneg %p123
      $region26: #{block_forward.1} parent=11 // pred_check_branch
        %217 = sbr.rel (%p215) target = $region28
      $region27: #{block_forward.1} parent=11 // pred_region
        _
      $region28: #{block_forward.1} parent=11 // pred_fallthru
        _
      // Predicated region
      $region29: #{block_forward.1} parent=11 // pred_check
        %p218 = pneg %p144
      $region30: #{block_forward.1} parent=11 // pred_check_branch
        %220 = sbr.rel (%p218) target = $region32
      $region31: #{block_forward.1} parent=11 // pred_region
        _
      $region32: #{block_forward.1} parent=11 // pred_fallthru
        _
      // Predicated region
      $region33: #{block_forward.1} parent=11 // pred_check
        %p221 = pneg %p165
      $region34: #{block_forward.1} parent=11 // pred_check_branch
        %223 = sbr.rel (%p221) target = $region36
      $region35: #{block_forward.1} parent=11 // pred_region
        _
      $region36: #{block_forward.1} parent=11 // pred_fallthru
        _
    $region12: #{block_forward.1} parent=5 // pred_fallthru
      _
    %p224 = scmp.lt.s32.totalorder %s13, 2
    // Predicated region
    $region37: #{block_forward.1} parent=5 // pred_check
      %p225 = pneg %p224
    $region38: #{block_forward.1} parent=5 // pred_check_branch
      %227 = sbr.rel (%p225) target = $region40
    $region39: #{block_forward.1} parent=5 // pred_region
      // Predicated region
      $region41: #{block_forward.1} parent=39 // pred_check
        %p228 = pneg %p33
      $region42: #{block_forward.1} parent=39 // pred_check_branch
        %230 = sbr.rel (%p228) target = $region44
      $region43: #{block_forward.1} parent=39 // pred_region
        %p231 = scmp.lt.s32.totalorder %s13, 1
        %s232 = scalar_select %p231, %s13, 1
        %s233 = smul.addr %s232, 4
        %s234 = smul.addr %s233, 8
        %s235 = scalar_lea.vmem %s0, %s234
      $region44: #{block_forward.1} parent=39 // pred_fallthru
        _
    $region40: #{block_forward.1} parent=5 // pred_fallthru
      _
    %p236 = scmp.le.s32.totalorder 1, %s13
    %p237 = scmp.lt.s32.totalorder %s13, 3
    %p238 = pnand %p236, %p237
    %p239 = pneg %p238
    // Predicated region
    $region45: #{block_forward.1} parent=5 // pred_check
      _
    $region46: #{block_forward.1} parent=5 // pred_check_branch
      %241 = sbr.rel (%p238) target = $region48
    $region47: #{block_forward.1} parent=5 // pred_region
      %s242 = ssub.s32 %s13, 1
      %p243 = scmp.lt.s32.totalorder %s18, 1
      %s244 = scalar_select %p243, %s18, 1
      %s245 = smul.addr %s244, 4
      %s246 = smul.addr %s245, 8
      %s247 = scalar_lea.vmem %s0, %s246
      %p248 = pneg %p39
      %p249 = pneg %p36
      %p250 = pneg %p60
      %p251 = pneg %p57
      %p252 = pneg %p81
      %p253 = pneg %p78
      %p254 = pneg %p102
      %p255 = pneg %p99
      %p256 = pneg %p123
      %p257 = pneg %p120
      %p258 = pneg %p144
      %p259 = pneg %p141
      %p260 = pneg %p165
      %p261 = pneg %p162
      %p262 = pneg %p191
      %p263 = pneg %p188
      %p264 = scmp.lt.s32.totalorder %s18, 1
      %s265 = scalar_select %p264, %s18, 1
      %s266 = smul.addr %s265, 10
      %s267 = smul.addr %s266, 8
      %s268 = scalar_lea.vmem %s7, %s267
      %p269 = scmp.lt.s32.totalorder %s18, 1
      %s270 = scalar_select %p269, %s18, 1
      %s271 = smul.addr %s270, 4
      %s272 = smul.addr %s271, 8
      %s273 = scalar_lea.vmem %s0, %s272
      %p274 = scmp.lt.s32.totalorder %s18, 1
      %s275 = scalar_select %p274, %s18, 1
      %s276 = smul.addr %s275, 10
      %s277 = smul.addr %s276, 8
      %s278 = scalar_lea.vmem %s7, %s277
      %v282 = vlaneseq
      %v283 = vand.u32 %v282, 127
      %v284 = vadd.s32 %v283, 128
      %vm285 = vcmp.lt.s32.totalorder %v283, 0
      %v286 = vsub.s32 0, %v283
      %v287 = vsel %vm285, %v286, %v283
      %v288 = vshrl.u32 %v287, 4
      %v289 = vand.u32 %v287, 15
      %v290 = vsub.s32 0, %v289
      %v291 = vsel %vm285, %v290, %v289
      %vm292 = vcmp.lt.s32.totalorder %v284, 0
      %v293 = vsub.s32 0, %v284
      %v294 = vsel %vm292, %v293, %v284
      %v295 = vshrl.u32 %v294, 4
      %v296 = vand.u32 %v294, 15
      %v297 = vsub.s32 0, %v296
      %v298 = vsel %vm292, %v297, %v296
      %vm299 = vcmp.ne.s32.totalorder %v291, 0
      %vm300 = vcmp.ne.s32.totalorder %v298, 0
      %vm301 = vcmp.lt.s32.totalorder %v291, 0
      %vm302 = vcmp.lt.s32.totalorder %v298, 0
      %vm303 = vmand %vm301, %vm299
      %vm304 = vmand %vm302, %vm300
      %v305 = vadd.s32 %v291, 16
      %v306 = vadd.s32 %v298, 16
      %v307 = vsel %vm303, %v305, %v291
      %v308 = vsel %vm304, %v306, %v298
      %v309 = vadd.s32 %v307, 4294967294
      %v310 = vadd.s32 %v308, 4294967294
      %vm311 = vcmp.ge.s32.totalorder %v309, 0
      %vm312 = vcmp.ge.s32.totalorder %v310, 0
      %vm313 = vcmp.lt.s32.totalorder %v309, 16
      %vm314 = vcmp.lt.s32.totalorder %v310, 16
      %vm315 = vmand %vm311, %vm313
      %vm316 = vmand %vm312, %vm314
      %v317 = vadd.s32 %v307, 4294967295
      %v318 = vadd.s32 %v308, 4294967295
      %vm319 = vcmp.ge.s32.totalorder %v317, 0
      %vm320 = vcmp.ge.s32.totalorder %v318, 0
      %vm321 = vcmp.lt.s32.totalorder %v317, 16
      %vm322 = vcmp.lt.s32.totalorder %v318, 16
      %vm323 = vmand %vm319, %vm321
      %vm324 = vmand %vm320, %vm322
      %v325 = vadd.s32 %v307, 1
      %v326 = vadd.s32 %v308, 1
      %vm327 = vcmp.ge.s32.totalorder %v325, 0
      %vm328 = vcmp.ge.s32.totalorder %v326, 0
      %vm329 = vcmp.lt.s32.totalorder %v325, 16
      %vm330 = vcmp.lt.s32.totalorder %v326, 16
      %vm331 = vmand %vm327, %vm329
      %vm332 = vmand %vm328, %vm330
      %v333 = vadd.s32 %v307, 2
      %v334 = vadd.s32 %v308, 2
      %vm335 = vcmp.ge.s32.totalorder %v333, 0
      %vm336 = vcmp.ge.s32.totalorder %v334, 0
      %vm337 = vcmp.lt.s32.totalorder %v333, 16
      %vm338 = vcmp.lt.s32.totalorder %v334, 16
      %vm339 = vmand %vm335, %vm337
      %vm340 = vmand %vm336, %vm338
      %v341 = vld [vmem:[%s1] sm:$0xf]
      %v342 = vld [vmem:[%s1 + $0x4] sm:$0xf]
      %v343 = vld [vmem:[%s1 + $0x8] sm:$0xf]
      %v344 = vld [vmem:[%s1 + $0xc] sm:$0x3]
      %v345 = vld [vmem:[%s2] sm:$0xff]
      %v346 = vld [vmem:[%s2 + $0x8] sm:$0xff]
      %v347 = vld [vmem:[%s2 + $0x10] sm:$0xff]
      %v348 = vld [vmem:[%s2 + $0x18] sm:$0xf]
      %v349 = vld [vmem:[%s3] sm:$0xf]
      %v350 = vld [vmem:[%s3 + $0x4] sm:$0xf]
      %v351 = vld [vmem:[%s4] sm:$0xff]
      %v352 = vld [vmem:[%s4 + $0x8] sm:$0xff]
      %v353 = vld [vmem:[%s5] sm:$0xf]
      %v354 = vld [vmem:[%s6] sm:$0xff]
      %v355 = vld [vmem:[%s273] sm:$0xff]
      %v356 = vld [vmem:[%s273 + $0x8] sm:$0xff]
      %v357 = vld [vmem:[%s273 + $0x10] sm:$0xff]
      %v358 = vld [vmem:[%s273 + $0x18] sm:$0xff]
      %363 = vrot.lane.b32.xlu0 %v355, 112
      %v364 = vpop.permute.xlu0 %363
      %365 = vrot.lane.b32.xlu0 %v356, 112
      %v366 = vpop.permute.xlu0 %365
      %367 = vrot.lane.b32.xlu0 %v357, 112
      %v368 = vpop.permute.xlu0 %367
      %369 = vrot.lane.b32.xlu0 %v358, 112
      %v370 = vpop.permute.xlu0 %369
      %vm371 = vcmask 916480
      %v372 = vsel %vm371, %v364, %v366
      %v373 = vsel %vm371, %v368, %v370
      %v380 = vmax.f32 %v355, %v372
      %v381 = vmax.f32 %v356, %v366
      %v382 = vmax.f32 %v357, %v373
      %v383 = vmax.f32 %v358, %v370
      %385 = vrot.lane.b32.xlu0 %v355, 96
      %v386 = vpop.permute.xlu0 %385
      %387 = vrot.lane.b32.xlu0 %v356, 96
      %v388 = vpop.permute.xlu0 %387
      %389 = vrot.lane.b32.xlu0 -inf, 96
      %v390 = vpop.permute.xlu0 %389
      %391 = vrot.lane.b32.xlu0 %v357, 96
      %v392 = vpop.permute.xlu0 %391
      %393 = vrot.lane.b32.xlu0 %v358, 96
      %v394 = vpop.permute.xlu0 %393
      %vm395 = vcmask 785408
      %v396 = vsel %vm395, %v386, %v388
      %v397 = vsel %vm395, %v388, %v390
      %v398 = vsel %vm395, %v392, %v394
      %v399 = vsel %vm395, %v394, %v390
      %v406 = vmax.f32 %v364, %v386
      %v407 = vmax.f32 %v380, %v396
      %v408 = vmax.f32 %v381, %v397
      %v409 = vmax.f32 %v368, %v392
      %v410 = vmax.f32 %v382, %v398
      %v411 = vmax.f32 %v383, %v399
      %418 = vrot.lane.b32.xlu0 %v406, 16
      %v419 = vpop.permute.xlu0 %418
      %420 = vrot.lane.b32.xlu0 %v407, 16
      %v421 = vpop.permute.xlu0 %420
      %422 = vrot.lane.b32.xlu0 %v408, 16
      %v423 = vpop.permute.xlu0 %422
      %424 = vrot.lane.b32.xlu0 %v409, 16
      %v425 = vpop.permute.xlu0 %424
      %426 = vrot.lane.b32.xlu0 %v410, 16
      %v427 = vpop.permute.xlu0 %426
      %428 = vrot.lane.b32.xlu0 %v411, 16
      %v429 = vpop.permute.xlu0 %428
      %vm430 = vcmask 130048
      %v431 = vsel %vm430, %v419, %v421
      %v432 = vsel %vm430, %v421, %v423
      %v433 = vsel %vm430, %v425, %v427
      %v434 = vsel %vm430, %v427, %v429
      %v435 = vsel %vm323, 1, 0
      %v436 = vsel %vm324, 1, 0
      %vm437 = vcmp.eq.s32.totalorder %v435, 1
      %vm438 = vcmp.eq.s32.totalorder %v436, 1
      %439 = vrot.lane.b32.xlu0 -inf, 1
      %v440 = vpop.permute.xlu0 %439
      %441 = vrot.lane.b32.xlu0 %v431, 1
      %v442 = vpop.permute.xlu0 %441
      %443 = vrot.lane.b32.xlu0 %v432, 1
      %v444 = vpop.permute.xlu0 %443
      %445 = vrot.lane.b32.xlu0 %v433, 1
      %v446 = vpop.permute.xlu0 %445
      %447 = vrot.lane.b32.xlu0 %v434, 1
      %v448 = vpop.permute.xlu0 %447
      %vm449 = vcmask 7168
      %v450 = vsel %vm449, %v440, %v442
      %v451 = vsel %vm449, %v442, %v444
      %v452 = vsel %vm449, %v440, %v446
      %v453 = vsel %vm449, %v446, %v448
      %v458 = vsel %vm437, %v450, -inf
      %v459 = vsel %vm438, %v451, -inf
      %v460 = vsel %vm437, %v452, -inf
      %v461 = vsel %vm438, %v453, -inf
      %v466 = vmax.f32 %v458, %v431
      %v467 = vmax.f32 %v459, %v432
      %v468 = vmax.f32 %v460, %v433
      %v469 = vmax.f32 %v461, %v434
      %v470 = vsel %vm331, 1, 0
      %v471 = vsel %vm332, 1, 0
      %vm472 = vcmp.eq.s32.totalorder %v470, 1
      %vm473 = vcmp.eq.s32.totalorder %v471, 1
      %474 = vrot.lane.b32.xlu0 %v431, 127
      %v475 = vpop.permute.xlu0 %474
      %476 = vrot.lane.b32.xlu0 %v432, 127
      %v477 = vpop.permute.xlu0 %476
      %478 = vrot.lane.b32.xlu0 -inf, 127
      %v479 = vpop.permute.xlu0 %478
      %480 = vrot.lane.b32.xlu0 %v433, 127
      %v481 = vpop.permute.xlu0 %480
      %482 = vrot.lane.b32.xlu0 %v434, 127
      %v483 = vpop.permute.xlu0 %482
      %vm484 = vcmask 1039360
      %v485 = vsel %vm484, %v475, %v477
      %v486 = vsel %vm484, %v477, %v479
      %v487 = vsel %vm484, %v481, %v483
      %v488 = vsel %vm484, %v483, %v479
      %v493 = vsel %vm472, %v485, -inf
      %v494 = vsel %vm473, %v486, -inf
      %v495 = vsel %vm472, %v487, -inf
      %v496 = vsel %vm473, %v488, -inf
      %v497 = vmax.f32 %v466, %v493
      %v498 = vmax.f32 %v467, %v494
      %v499 = vmax.f32 %v468, %v495
      %v500 = vmax.f32 %v469, %v496
      %v501 = vpack.c.bf16 %v357, %v355
      %v502 = vpack.c.bf16 %v358, %v356
      %v503 = vpack.c.bf16 %v499, %v497
      %v504 = vpack.c.bf16 %v500, %v498
      %506 = vset.pattern.permute.xlu0 0
      %507 = vperm.xlu0 %506, %v345
      %v508 = vpop.permute.xlu0 %507
      %511 = vset.pattern.permute.xlu0 0
      %512 = vperm.xlu0 %511, %v346
      %v513 = vpop.permute.xlu0 %512
      %516 = vset.pattern.permute.xlu0 0
      %517 = vperm.xlu0 %516, %v347
      %v518 = vpop.permute.xlu0 %517
      %521 = vset.pattern.permute.xlu0 0
      %522 = vperm.xlu0 %521, %v348
      %v523 = vpop.permute.xlu0 %522
      %v529 = vunpack.c.l.b16 %v341
      %v530 = vunpack.c.l.b16 %v342
      %v531 = vunpack.c.l.b16 %v343
      %v532 = vunpack.c.l.b16 %v344
      %v533 = vpack.c.b16 %v530, %v529
      %v534 = vpack.c.b16 %v532, %v531
      %vm535 = vcmask 261120
      %v537 = vsel %vm535, %v533, 0
      %v540 = vsel %vm535, %v534, 0
      %542 = vmatprep.subr.bf16.mxu0 0
      %543 = vmatpush1.bf16.msra.mxu0 0
      %544 = vmatprep.subr.bf16.mxu0 0
      %545 = vmatpush1.bf16.msra.mxu0 0
      %546 = vmatprep.subr.bf16.mxu0 0
      %547 = vmatpush1.bf16.msra.mxu0 0
      %548 = vmatprep.subr.bf16.mxu0 0
      %549 = vmatpush1.bf16.msra.mxu0 0
      %550 = vmatprep.subr.bf16.mxu0 0
      %551 = vmatpush1.bf16.msra.mxu0 0
      %552 = vmatprep.subr.bf16.mxu0 0
      %553 = vmatpush1.bf16.msra.mxu0 0
      %554 = vmatprep.subr.bf16.mxu0 %v504
      %555 = vmatpush1.bf16.msra.mxu0 %v503
      %556 = vmatprep.subr.bf16.mxu0 %v502
      %557 = vmatpush1.bf16.msra.mxu0 %v501
      %558 = vmatprep.subr.bf16.mxu0 0
      %559 = vmatpush2.bf16.msra.mxu0 0
      %560 = vmatprep.subr.bf16.mxu0 0
      %561 = vmatpush2.bf16.msra.mxu0 0
      %562 = vmatprep.subr.bf16.mxu0 0
      %563 = vmatpush2.bf16.msra.mxu0 0
      %564 = vmatprep.subr.bf16.mxu0 0
      %565 = vmatpush2.bf16.msra.mxu0 0
      %566 = vmatprep.subr.bf16.mxu0 0
      %567 = vmatpush2.bf16.msra.mxu0 0
      %568 = vmatprep.subr.bf16.mxu0 0
      %569 = vmatpush2.bf16.msra.mxu0 0
      %570 = vmatprep.subr.bf16.mxu0 0
      %571 = vmatpush2.bf16.msra.mxu0 0
      %572 = vmatprep.subr.bf16.mxu0 0
      %573 = vmatpush2.bf16.msra.mxu0 0
      %574 = vmatprep.mubr.bf16.mxu0 0
      %575 = vmatmul.mubr.bf16.gmra.mxu0 %v537
      %v576 = vpop.f32.mrf.mxu0
      %v577 = vadd.f32 %v508, %v576
      %v578 = vpop.f32.mrf.mxu0
      %v579 = vadd.f32 %v508, %v578
      %v580 = vpop.f32.mrf.mxu0
      %v581 = vadd.f32 %v513, %v580
      %v582 = vpop.f32.mrf.mxu0
      %v583 = vadd.f32 %v513, %v582
      %584 = vmatprep.mubr.bf16.mxu0 0
      %585 = vmatmul.mubr.bf16.gmra.mxu0 %v540
      %v586 = vpop.f32.mrf.mxu0
      %v587 = vadd.f32 %v518, %v586
      %v588 = vpop.f32.mrf.mxu0
      %v589 = vadd.f32 %v518, %v588
      %v590 = vpop.f32.mrf.mxu0
      %v591 = vadd.f32 %v523, %v590
      %v592 = vpop.f32.mrf.mxu0
      %v593 = vadd.f32 %v523, %v592
      %594 = vdwg.mxu0
      %v595 = vmax.f32 %v577, 0.0
      %v596 = vmax.f32 %v579, 0.0
      %v597 = vmax.f32 %v581, 0.0
      %v598 = vmax.f32 %v583, 0.0
      %v599 = vmax.f32 %v587, 0.0
      %v600 = vmax.f32 %v589, 0.0
      %v601 = vmax.f32 %v591, 0.0
      %v602 = vmax.f32 %v593, 0.0
      %v603 = vpack.c.bf16 %v597, %v597
      %v604 = vpack.c.bf16 %v598, %v598
      %v605 = vpack.c.bf16 %v599, %v599
      %v606 = vpack.c.bf16 %v600, %v600
      %vm607 = vmpackc.low %vm438, %vm437
      %v608 = vsel %vm607, 65537, 0
      %v609 = vlaneseq
      %v610 = vshrl.u32 %v609, 7
      %v611 = vsub.s32 0, %v610
      %v612 = vrot.slane %v608, %v611
      %v613 = vlaneseq
      %v614 = vshrl.u32 %v613, 7
      %v615 = vsub.s32 4, %v614
      %v616 = vrot.slane %v608, %v615
      %617 = vrot.lane.b32.xlu0 %v612, 111
      %v618 = vpop.permute.xlu0 %617
      %619 = vrot.lane.b32.xlu0 %v616, 111
      %v620 = vpop.permute.xlu0 %619
      %vm621 = vcmask 908288
      %v622 = vsel %vm621, %v618, %v620
      %vm623 = vcmp.ne.s16.totalorder %v622, 0
      %vm624 = vcmp.ne.s16.totalorder %v620, 0
      %v625 = vsel %vm623, %v603, 0
      %v626 = vsel %vm624, %v604, 0
      %vm627 = vmpackc.low %vm473, %vm472
      %v628 = vsel %vm627, 65537, 0
      %v629 = vlaneseq
      %v630 = vshrl.u32 %v629, 7
      %v631 = vsub.s32 0, %v630
      %v632 = vrot.slane %v628, %v631
      %v633 = vlaneseq
      %v634 = vshrl.u32 %v633, 7
      %v635 = vsub.s32 4, %v634
      %v636 = vrot.slane %v628, %v635
      %637 = vrot.lane.b32.xlu0 %v632, 113
      %v638 = vpop.permute.xlu0 %637
      %639 = vrot.lane.b32.xlu0 %v636, 113
      %v640 = vpop.permute.xlu0 %639
      %vm641 = vcmask 924672
      %v642 = vsel %vm641, %v638, %v640
      %vm643 = vcmp.ne.s16.totalorder %v642, 0
      %vm644 = vcmp.ne.s16.totalorder %v640, 0
      %v645 = vsel %vm643, %v603, 0
      %v646 = vsel %vm644, %v604, 0
      %647 = vrot.lane.b32.xlu0 %v612, 127
      %v648 = vpop.permute.xlu0 %647
      %649 = vrot.lane.b32.xlu0 %v616, 127
      %v650 = vpop.permute.xlu0 %649
      %vm651 = vcmask 1039360
      %v652 = vsel %vm651, %v648, %v650
      %vm653 = vcmp.ne.s16.totalorder %v652, 0
      %vm654 = vcmp.ne.s16.totalorder %v650, 0
      %v655 = vsel %vm653, %v603, 0
      %v656 = vsel %vm654, %v604, 0
      %657 = vrot.lane.b32.xlu0 %v632, 1
      %v658 = vpop.permute.xlu0 %657
      %659 = vrot.lane.b32.xlu0 %v636, 1
      %v660 = vpop.permute.xlu0 %659
      %vm661 = vcmask 7168
      %v662 = vsel %vm661, %v658, %v660
      %vm663 = vcmp.ne.s16.totalorder %v658, 0
      %vm664 = vcmp.ne.s16.totalorder %v662, 0
      %v665 = vsel %vm663, %v603, 0
      %v666 = vsel %vm664, %v604, 0
      %667 = vrot.lane.b32.xlu0 %v612, 15
      %v668 = vpop.permute.xlu0 %667
      %669 = vrot.lane.b32.xlu0 %v616, 15
      %v670 = vpop.permute.xlu0 %669
      %vm671 = vcmask 121856
      %v672 = vsel %vm671, %v668, %v670
      %vm673 = vcmp.ne.s16.totalorder %v668, 0
      %vm674 = vcmp.ne.s16.totalorder %v672, 0
      %v675 = vsel %vm673, %v603, 0
      %v676 = vsel %vm674, %v604, 0
      %677 = vrot.lane.b32.xlu0 %v632, 17
      %v678 = vpop.permute.xlu0 %677
      %679 = vrot.lane.b32.xlu0 %v636, 17
      %v680 = vpop.permute.xlu0 %679
      %vm681 = vcmask 138240
      %v682 = vsel %vm681, %v678, %v680
      %vm683 = vcmp.ne.s16.totalorder %v678, 0
      %vm684 = vcmp.ne.s16.totalorder %v682, 0
      %v685 = vsel %vm683, %v603, 0
      %v686 = vsel %vm684, %v604, 0
      %v690 = vrot.slane 0, 4
      %v691 = vrot.slane %v603, 4
      %v692 = vrot.slane %v604, 4
      %693 = vrot.lane.b32.xlu0 %v690, 127
      %v694 = vpop.permute.xlu0 %693
      %695 = vrot.lane.b32.xlu0 %v691, 127
      %v696 = vpop.permute.xlu0 %695
      %697 = vrot.lane.b32.xlu0 %v692, 127
      %v698 = vpop.permute.xlu0 %697
      %v699 = vsel %vm651, %v694, %v696
      %v700 = vsel %vm651, %v696, %v698
      %703 = vrot.lane.b32.xlu0 0, 126
      %v704 = vpop.permute.xlu0 %703
      %705 = vrot.lane.b32.xlu0 %v645, 126
      %v706 = vpop.permute.xlu0 %705
      %707 = vrot.lane.b32.xlu0 %v646, 126
      %v708 = vpop.permute.xlu0 %707
      %vm709 = vcmask 1031168
      %v710 = vsel %vm709, %v704, %v706
      %v711 = vsel %vm709, %v706, %v708
      %v714 = vrot.slane %v655, 4
      %v715 = vrot.slane %v656, 4
      %716 = vrot.lane.b32.xlu0 %v690, 112
      %v717 = vpop.permute.xlu0 %716
      %718 = vrot.lane.b32.xlu0 %v714, 112
      %v719 = vpop.permute.xlu0 %718
      %720 = vrot.lane.b32.xlu0 %v715, 112
      %v721 = vpop.permute.xlu0 %720
      %vm722 = vcmask 916480
      %v723 = vsel %vm722, %v717, %v719
      %v724 = vsel %vm722, %v719, %v721
      %725 = vrot.lane.b32.xlu0 %v603, 111
      %v726 = vpop.permute.xlu0 %725
      %727 = vrot.lane.b32.xlu0 %v604, 111
      %v728 = vpop.permute.xlu0 %727
      %v729 = vsel %vm621, %v726, %v728
      %v732 = vrot.slane %v665, 4
      %v733 = vrot.slane %v666, 4
      %734 = vrot.lane.b32.xlu0 %v732, 110
      %v735 = vpop.permute.xlu0 %734
      %736 = vrot.lane.b32.xlu0 %v733, 110
      %v737 = vpop.permute.xlu0 %736
      %738 = vrot.lane.b32.xlu0 %v690, 110
      %v739 = vpop.permute.xlu0 %738
      %vm740 = vcmask 900096
      %v741 = vsel %vm740, %v735, %v737
      %v742 = vsel %vm740, %v737, %v739
      %745 = vrot.lane.b32.xlu0 %v675, 96
      %v746 = vpop.permute.xlu0 %745
      %747 = vrot.lane.b32.xlu0 %v676, 96
      %v748 = vpop.permute.xlu0 %747
      %749 = vrot.lane.b32.xlu0 0, 96
      %v750 = vpop.permute.xlu0 %749
      %vm751 = vcmask 785408
      %v752 = vsel %vm751, %v746, %v748
      %v753 = vsel %vm751, %v748, %v750
      %754 = vrot.lane.b32.xlu0 %v691, 95
      %v755 = vpop.permute.xlu0 %754
      %756 = vrot.lane.b32.xlu0 %v692, 95
      %v757 = vpop.permute.xlu0 %756
      %758 = vrot.lane.b32.xlu0 %v690, 95
      %v759 = vpop.permute.xlu0 %758
      %vm760 = vcmask 777216
      %v761 = vsel %vm760, %v755, %v757
      %v762 = vsel %vm760, %v757, %v759
      %765 = vrot.lane.b32.xlu0 %v685, 94
      %v766 = vpop.permute.xlu0 %765
      %767 = vrot.lane.b32.xlu0 %v686, 94
      %v768 = vpop.permute.xlu0 %767
      %769 = vrot.lane.b32.xlu0 0, 94
      %v770 = vpop.permute.xlu0 %769
      %vm771 = vcmask 769024
      %v772 = vsel %vm771, %v766, %v768
      %v773 = vsel %vm771, %v768, %v770
      %vm774 = vcmask 1043456
      %v777 = vsel %vm774, 0, %v699
      %v780 = vsel %vm774, %v625, %v700
      %v783 = vsel %vm774, %v626, %v698
      %v786 = vsel %vm774, %v710, %v723
      %v789 = vsel %vm774, %v711, %v724
      %v792 = vsel %vm774, %v708, %v721
      %v795 = vsel %vm774, %v726, %v735
      %v798 = vsel %vm774, %v729, %v741
      %v801 = vsel %vm774, %v728, %v742
      %v804 = vsel %vm774, %v746, %v755
      %v807 = vsel %vm774, %v752, %v761
      %v810 = vsel %vm774, %v753, %v762
      %812 = vset.pattern.permute.xlu0 0
      %813 = vperm.xlu0 %812, %v351
      %v814 = vpop.permute.xlu0 %813
      %817 = vset.pattern.permute.xlu0 0
      %818 = vperm.xlu0 %817, %v352
      %v819 = vpop.permute.xlu0 %818
      %v823 = vunpack.c.l.b16 %v349
      %v824 = vunpack.c.l.b16 %v350
      %v825 = vpack.c.b16 %v824, %v823
      %838 = vrot.lane.b32.xlu0 %v777, 17
      %v839 = vpop.permute.xlu0 %838
      %840 = vrot.lane.b32.xlu0 %v780, 17
      %v841 = vpop.permute.xlu0 %840
      %842 = vrot.lane.b32.xlu0 %v783, 17
      %v843 = vpop.permute.xlu0 %842
      %844 = vrot.lane.b32.xlu0 %v786, 17
      %v845 = vpop.permute.xlu0 %844
      %846 = vrot.lane.b32.xlu0 %v789, 17
      %v847 = vpop.permute.xlu0 %846
      %848 = vrot.lane.b32.xlu0 %v792, 17
      %v849 = vpop.permute.xlu0 %848
      %850 = vrot.lane.b32.xlu0 %v795, 17
      %v851 = vpop.permute.xlu0 %850
      %852 = vrot.lane.b32.xlu0 %v798, 17
      %v853 = vpop.permute.xlu0 %852
      %854 = vrot.lane.b32.xlu0 %v801, 17
      %v855 = vpop.permute.xlu0 %854
      %856 = vrot.lane.b32.xlu0 %v804, 17
      %v857 = vpop.permute.xlu0 %856
      %858 = vrot.lane.b32.xlu0 %v807, 17
      %v859 = vpop.permute.xlu0 %858
      %860 = vrot.lane.b32.xlu0 %v810, 17
      %v861 = vpop.permute.xlu0 %860
      %862 = vrot.lane.b32.xlu0 %v766, 17
      %v863 = vpop.permute.xlu0 %862
      %864 = vrot.lane.b32.xlu0 %v772, 17
      %v865 = vpop.permute.xlu0 %864
      %866 = vrot.lane.b32.xlu0 %v773, 17
      %v867 = vpop.permute.xlu0 %866
      %v868 = vsel %vm681, %v839, %v841
      %v869 = vsel %vm681, %v841, %v843
      %v870 = vsel %vm681, %v845, %v847
      %v871 = vsel %vm681, %v847, %v849
      %v872 = vsel %vm681, %v851, %v853
      %v873 = vsel %vm681, %v853, %v855
      %v874 = vsel %vm681, %v857, %v859
      %v875 = vsel %vm681, %v859, %v861
      %v876 = vsel %vm681, %v863, %v865
      %v877 = vsel %vm681, %v865, %v867
      %vm886 = vcmask 588800
      %v888 = vsel %vm886, %v825, 0
      %v891 = vsel %vm774, %v876, 0
      %v894 = vsel %vm774, %v877, 0
      %896 = vmatprep.subr.bf16.mxu0 0
      %897 = vmatpush1.bf16.msra.mxu0 0
      %898 = vmatprep.subr.bf16.mxu0 0
      %899 = vmatpush1.bf16.msra.mxu0 0
      %900 = vmatprep.subr.bf16.mxu0 0
      %901 = vmatpush1.bf16.msra.mxu0 0
      %902 = vmatprep.subr.bf16.mxu0 %v894
      %903 = vmatpush1.bf16.msra.mxu0 %v891
      %904 = vmatprep.subr.bf16.mxu0 %v875
      %905 = vmatpush1.bf16.msra.mxu0 %v874
      %906 = vmatprep.subr.bf16.mxu0 %v873
      %907 = vmatpush1.bf16.msra.mxu0 %v872
      %908 = vmatprep.subr.bf16.mxu0 %v871
      %909 = vmatpush1.bf16.msra.mxu0 %v870
      %910 = vmatprep.subr.bf16.mxu0 %v869
      %911 = vmatpush1.bf16.msra.mxu0 %v868
      %912 = vmatprep.subr.bf16.mxu0 0
      %913 = vmatpush2.bf16.msra.mxu0 0
      %914 = vmatprep.subr.bf16.mxu0 0
      %915 = vmatpush2.bf16.msra.mxu0 0
      %916 = vmatprep.subr.bf16.mxu0 0
      %917 = vmatpush2.bf16.msra.mxu0 0
      %918 = vmatprep.subr.bf16.mxu0 0
      %919 = vmatpush2.bf16.msra.mxu0 0
      %920 = vmatprep.subr.bf16.mxu0 0
      %921 = vmatpush2.bf16.msra.mxu0 0
      %922 = vmatprep.subr.bf16.mxu0 0
      %923 = vmatpush2.bf16.msra.mxu0 0
      %924 = vmatprep.subr.bf16.mxu0 0
      %925 = vmatpush2.bf16.msra.mxu0 0
      %926 = vmatprep.subr.bf16.mxu0 0
      %927 = vmatpush2.bf16.msra.mxu0 0
      %928 = vmatprep.mubr.bf16.mxu0 0
      %929 = vmatmul.mubr.bf16.gmra.mxu0 %v888
      %v930 = vpop.f32.mrf.mxu0
      %v931 = vadd.f32 %v814, %v930
      %v932 = vpop.f32.mrf.mxu0
      %v933 = vadd.f32 %v814, %v932
      %v934 = vpop.f32.mrf.mxu0
      %v935 = vadd.f32 %v819, %v934
      %v936 = vpop.f32.mrf.mxu0
      %v937 = vadd.f32 %v819, %v936
      %938 = vdwg.mxu0
      %v939 = vmax.f32 %v931, 0.0
      %v940 = vmax.f32 %v933, 0.0
      %v941 = vmax.f32 %v935, 0.0
      %v942 = vmax.f32 %v937, 0.0
      %v943 = vsel %vm315, 1, 0
      %v944 = vsel %vm316, 1, 0
      %vm945 = vcmp.eq.s32.totalorder %v943, 1
      %vm946 = vcmp.eq.s32.totalorder %v944, 1
      %vm947 = vmpackc.low %vm946, %vm945
      %v948 = vsel %vm947, 65537, 0
      %v949 = vlaneseq
      %v950 = vshrl.u32 %v949, 7
      %v951 = vsub.s32 0, %v950
      %v952 = vrot.slane %v948, %v951
      %v953 = vlaneseq
      %v954 = vshrl.u32 %v953, 7
      %v955 = vsub.s32 4, %v954
      %v956 = vrot.slane %v948, %v955
      %957 = vrot.lane.b32.xlu0 %v952, 94
      %v958 = vpop.permute.xlu0 %957
      %959 = vrot.lane.b32.xlu0 %v956, 94
      %v960 = vpop.permute.xlu0 %959
      %v961 = vsel %vm771, %v958, %v960
      %vm962 = vcmp.ne.s16.totalorder %v961, 0
      %vm963 = vcmp.ne.s16.totalorder %v960, 0
      %v964 = vsel %vm962, %v605, 0
      %v965 = vsel %vm963, %v606, 0
      %966 = vrot.lane.b32.xlu0 %v612, 95
      %v967 = vpop.permute.xlu0 %966
      %968 = vrot.lane.b32.xlu0 %v616, 95
      %v969 = vpop.permute.xlu0 %968
      %v970 = vsel %vm760, %v967, %v969
      %vm971 = vcmp.ne.s16.totalorder %v970, 0
      %vm972 = vcmp.ne.s16.totalorder %v969, 0
      %v973 = vsel %vm971, %v605, 0
      %v974 = vsel %vm972, %v606, 0
      %975 = vrot.lane.b32.xlu0 %v632, 97
      %v976 = vpop.permute.xlu0 %975
      %977 = vrot.lane.b32.xlu0 %v636, 97
      %v978 = vpop.permute.xlu0 %977
      %vm979 = vcmask 793600
      %v980 = vsel %vm979, %v976, %v978
      %vm981 = vcmp.ne.s16.totalorder %v980, 0
      %vm982 = vcmp.ne.s16.totalorder %v978, 0
      %v983 = vsel %vm981, %v605, 0
      %v984 = vsel %vm982, %v606, 0
      %v985 = vsel %vm339, 1, 0
      %v986 = vsel %vm340, 1, 0
      %vm987 = vcmp.eq.s32.totalorder %v985, 1
      %vm988 = vcmp.eq.s32.totalorder %v986, 1
      %vm989 = vmpackc.low %vm988, %vm987
      %v990 = vsel %vm989, 65537, 0
      %v991 = vlaneseq
      %v992 = vshrl.u32 %v991, 7
      %v993 = vsub.s32 0, %v992
      %v994 = vrot.slane %v990, %v993
      %v995 = vlaneseq
      %v996 = vshrl.u32 %v995, 7
      %v997 = vsub.s32 4, %v996
      %v998 = vrot.slane %v990, %v997
      %999 = vrot.lane.b32.xlu0 %v994, 98
      %v1000 = vpop.permute.xlu0 %999
      %1001 = vrot.lane.b32.xlu0 %v998, 98
      %v1002 = vpop.permute.xlu0 %1001
      %vm1003 = vcmask 801792
      %v1004 = vsel %vm1003, %v1000, %v1002
      %vm1005 = vcmp.ne.s16.totalorder %v1004, 0
      %vm1006 = vcmp.ne.s16.totalorder %v1002, 0
      %v1007 = vsel %vm1005, %v605, 0
      %v1008 = vsel %vm1006, %v606, 0
      %1009 = vrot.lane.b32.xlu0 %v952, 110
      %v1010 = vpop.permute.xlu0 %1009
      %1011 = vrot.lane.b32.xlu0 %v956, 110
      %v1012 = vpop.permute.xlu0 %1011
      %v1013 = vsel %vm740, %v1010, %v1012
      %vm1014 = vcmp.ne.s16.totalorder %v1013, 0
      %vm1015 = vcmp.ne.s16.totalorder %v1012, 0
      %v1016 = vsel %vm1014, %v605, 0
      %v1017 = vsel %vm1015, %v606, 0
      %v1018 = vsel %vm623, %v605, 0
      %v1019 = vsel %vm624, %v606, 0
      %v1020 = vsel %vm643, %v605, 0
      %v1021 = vsel %vm644, %v606, 0
      %1022 = vrot.lane.b32.xlu0 %v994, 114
      %v1023 = vpop.permute.xlu0 %1022
      %1024 = vrot.lane.b32.xlu0 %v998, 114
      %v1025 = vpop.permute.xlu0 %1024
      %vm1026 = vcmask 932864
      %v1027 = vsel %vm1026, %v1023, %v1025
      %vm1028 = vcmp.ne.s16.totalorder %v1027, 0
      %vm1029 = vcmp.ne.s16.totalorder %v1025, 0
      %v1030 = vsel %vm1028, %v605, 0
      %v1031 = vsel %vm1029, %v606, 0
      %1032 = vrot.lane.b32.xlu0 %v952, 126
      %v1033 = vpop.permute.xlu0 %1032
      %1034 = vrot.lane.b32.xlu0 %v956, 126
      %v1035 = vpop.permute.xlu0 %1034
      %v1036 = vsel %vm709, %v1033, %v1035
      %vm1037 = vcmp.ne.s16.totalorder %v1036, 0
      %vm1038 = vcmp.ne.s16.totalorder %v1035, 0
      %v1039 = vsel %vm1037, %v605, 0
      %v1040 = vsel %vm1038, %v606, 0
      %v1041 = vsel %vm653, %v605, 0
      %v1042 = vsel %vm654, %v606, 0
      %v1043 = vsel %vm663, %v605, 0
      %v1044 = vsel %vm664, %v606, 0
      %1045 = vrot.lane.b32.xlu0 %v994, 2
      %v1046 = vpop.permute.xlu0 %1045
      %1047 = vrot.lane.b32.xlu0 %v998, 2
      %v1048 = vpop.permute.xlu0 %1047
      %vm1049 = vcmask 15360
      %v1050 = vsel %vm1049, %v1046, %v1048
      %vm1051 = vcmp.ne.s16.totalorder %v1046, 0
      %vm1052 = vcmp.ne.s16.totalorder %v1050, 0
      %v1053 = vsel %vm1051, %v605, 0
      %v1054 = vsel %vm1052, %v606, 0
      %1055 = vrot.lane.b32.xlu0 %v952, 14
      %v1056 = vpop.permute.xlu0 %1055
      %1057 = vrot.lane.b32.xlu0 %v956, 14
      %v1058 = vpop.permute.xlu0 %1057
      %vm1059 = vcmask 113664
      %v1060 = vsel %vm1059, %v1056, %v1058
      %vm1061 = vcmp.ne.s16.totalorder %v1056, 0
      %vm1062 = vcmp.ne.s16.totalorder %v1060, 0
      %v1063 = vsel %vm1061, %v605, 0
      %v1064 = vsel %vm1062, %v606, 0
      %v1065 = vsel %vm673, %v605, 0
      %v1066 = vsel %vm674, %v606, 0
      %v1067 = vsel %vm683, %v605, 0
      %v1068 = vsel %vm684, %v606, 0
      %1069 = vrot.lane.b32.xlu0 %v994, 18
      %v1070 = vpop.permute.xlu0 %1069
      %1071 = vrot.lane.b32.xlu0 %v998, 18
      %v1072 = vpop.permute.xlu0 %1071
      %vm1073 = vcmask 146432
      %v1074 = vsel %vm1073, %v1070, %v1072
      %vm1075 = vcmp.ne.s16.totalorder %v1070, 0
      %vm1076 = vcmp.ne.s16.totalorder %v1074, 0
      %v1077 = vsel %vm1075, %v605, 0
      %v1078 = vsel %vm1076, %v606, 0
      %1079 = vrot.lane.b32.xlu0 %v952, 30
      %v1080 = vpop.permute.xlu0 %1079
      %1081 = vrot.lane.b32.xlu0 %v956, 30
      %v1082 = vpop.permute.xlu0 %1081
      %vm1083 = vcmask 244736
      %v1084 = vsel %vm1083, %v1080, %v1082
      %vm1085 = vcmp.ne.s16.totalorder %v1080, 0
      %vm1086 = vcmp.ne.s16.totalorder %v1084, 0
      %v1087 = vsel %vm1085, %v605, 0
      %v1088 = vsel %vm1086, %v606, 0
      %1089 = vrot.lane.b32.xlu0 %v612, 31
      %v1090 = vpop.permute.xlu0 %1089
      %1091 = vrot.lane.b32.xlu0 %v616, 31
      %v1092 = vpop.permute.xlu0 %1091
      %vm1093 = vcmask 252928
      %v1094 = vsel %vm1093, %v1090, %v1092
      %vm1095 = vcmp.ne.s16.totalorder %v1090, 0
      %vm1096 = vcmp.ne.s16.totalorder %v1094, 0
      %v1097 = vsel %vm1095, %v605, 0
      %v1098 = vsel %vm1096, %v606, 0
      %1099 = vrot.lane.b32.xlu0 %v632, 33
      %v1100 = vpop.permute.xlu0 %1099
      %1101 = vrot.lane.b32.xlu0 %v636, 33
      %v1102 = vpop.permute.xlu0 %1101
      %vm1103 = vcmask 269312
      %v1104 = vsel %vm1103, %v1100, %v1102
      %vm1105 = vcmp.ne.s16.totalorder %v1100, 0
      %vm1106 = vcmp.ne.s16.totalorder %v1104, 0
      %v1107 = vsel %vm1105, %v605, 0
      %v1108 = vsel %vm1106, %v606, 0
      %1109 = vrot.lane.b32.xlu0 %v994, 34
      %v1110 = vpop.permute.xlu0 %1109
      %1111 = vrot.lane.b32.xlu0 %v998, 34
      %v1112 = vpop.permute.xlu0 %1111
      %vm1113 = vcmask 277504
      %v1114 = vsel %vm1113, %v1110, %v1112
      %vm1115 = vcmp.ne.s16.totalorder %v1110, 0
      %vm1116 = vcmp.ne.s16.totalorder %v1114, 0
      %v1117 = vsel %vm1115, %v605, 0
      %v1118 = vsel %vm1116, %v606, 0
      %v1121 = vrot.slane 0, 6
      %v1122 = vrot.slane %v973, 6
      %v1123 = vrot.slane %v974, 6
      %1124 = vrot.lane.b32.xlu0 %v1121, 127
      %v1125 = vpop.permute.xlu0 %1124
      %1126 = vrot.lane.b32.xlu0 %v1122, 127
      %v1127 = vpop.permute.xlu0 %1126
      %1128 = vrot.lane.b32.xlu0 %v1123, 127
      %v1129 = vpop.permute.xlu0 %1128
      %v1130 = vsel %vm651, %v1125, %v1127
      %v1131 = vsel %vm651, %v1127, %v1129
      %v1134 = vrot.slane %v605, 4
      %v1135 = vrot.slane %v606, 4
      %1136 = vrot.lane.b32.xlu0 %v690, 126
      %v1137 = vpop.permute.xlu0 %1136
      %1138 = vrot.lane.b32.xlu0 %v1134, 126
      %v1139 = vpop.permute.xlu0 %1138
      %1140 = vrot.lane.b32.xlu0 %v1135, 126
      %v1141 = vpop.permute.xlu0 %1140
      %v1142 = vsel %vm709, %v1137, %v1139
      %v1143 = vsel %vm709, %v1139, %v1141
      %v1146 = vrot.slane 0, 2
      %v1147 = vrot.slane %v983, 2
      %v1148 = vrot.slane %v984, 2
      %1149 = vrot.lane.b32.xlu0 %v1146, 125
      %v1150 = vpop.permute.xlu0 %1149
      %1151 = vrot.lane.b32.xlu0 %v1147, 125
      %v1152 = vpop.permute.xlu0 %1151
      %1153 = vrot.lane.b32.xlu0 %v1148, 125
      %v1154 = vpop.permute.xlu0 %1153
      %vm1155 = vcmask 1022976
      %v1156 = vsel %vm1155, %v1150, %v1152
      %v1157 = vsel %vm1155, %v1152, %v1154
      %1160 = vrot.lane.b32.xlu0 0, 124
      %v1161 = vpop.permute.xlu0 %1160
      %1162 = vrot.lane.b32.xlu0 %v1007, 124
      %v1163 = vpop.permute.xlu0 %1162
      %1164 = vrot.lane.b32.xlu0 %v1008, 124
      %v1165 = vpop.permute.xlu0 %1164
      %vm1166 = vcmask 1014784
      %v1167 = vsel %vm1166, %v1161, %v1163
      %v1168 = vsel %vm1166, %v1163, %v1165
      %v1171 = vrot.slane %v1016, 6
      %v1172 = vrot.slane %v1017, 6
      %1173 = vrot.lane.b32.xlu0 %v1121, 112
      %v1174 = vpop.permute.xlu0 %1173
      %1175 = vrot.lane.b32.xlu0 %v1171, 112
      %v1176 = vpop.permute.xlu0 %1175
      %1177 = vrot.lane.b32.xlu0 %v1172, 112
      %v1178 = vpop.permute.xlu0 %1177
      %v1179 = vsel %vm722, %v1174, %v1176
      %v1180 = vsel %vm722, %v1176, %v1178
      %v1183 = vrot.slane %v1018, 4
      %v1184 = vrot.slane %v1019, 4
      %1185 = vrot.lane.b32.xlu0 %v690, 111
      %v1186 = vpop.permute.xlu0 %1185
      %1187 = vrot.lane.b32.xlu0 %v1183, 111
      %v1188 = vpop.permute.xlu0 %1187
      %1189 = vrot.lane.b32.xlu0 %v1184, 111
      %v1190 = vpop.permute.xlu0 %1189
      %v1191 = vsel %vm621, %v1186, %v1188
      %v1192 = vsel %vm621, %v1188, %v1190
      %v1193 = vrot.slane %v605, 2
      %v1194 = vrot.slane %v606, 2
      %1195 = vrot.lane.b32.xlu0 %v1146, 110
      %v1196 = vpop.permute.xlu0 %1195
      %1197 = vrot.lane.b32.xlu0 %v1193, 110
      %v1198 = vpop.permute.xlu0 %1197
      %1199 = vrot.lane.b32.xlu0 %v1194, 110
      %v1200 = vpop.permute.xlu0 %1199
      %v1201 = vsel %vm740, %v1196, %v1198
      %v1202 = vsel %vm740, %v1198, %v1200
      %1205 = vrot.lane.b32.xlu0 0, 109
      %v1206 = vpop.permute.xlu0 %1205
      %1207 = vrot.lane.b32.xlu0 %v1020, 109
      %v1208 = vpop.permute.xlu0 %1207
      %1209 = vrot.lane.b32.xlu0 %v1021, 109
      %v1210 = vpop.permute.xlu0 %1209
      %vm1211 = vcmask 891904
      %v1212 = vsel %vm1211, %v1206, %v1208
      %v1213 = vsel %vm1211, %v1208, %v1210
      %v1216 = vrot.slane %v1030, 6
      %v1217 = vrot.slane %v1031, 6
      %1218 = vrot.lane.b32.xlu0 %v1121, 108
      %v1219 = vpop.permute.xlu0 %1218
      %1220 = vrot.lane.b32.xlu0 %v1216, 108
      %v1221 = vpop.permute.xlu0 %1220
      %1222 = vrot.lane.b32.xlu0 %v1217, 108
      %v1223 = vpop.permute.xlu0 %1222
      %vm1224 = vcmask 883712
      %v1225 = vsel %vm1224, %v1219, %v1221
      %v1226 = vsel %vm1224, %v1221, %v1223
      %v1229 = vrot.slane %v1039, 4
      %v1230 = vrot.slane %v1040, 4
      %1231 = vrot.lane.b32.xlu0 %v690, 96
      %v1232 = vpop.permute.xlu0 %1231
      %1233 = vrot.lane.b32.xlu0 %v1229, 96
      %v1234 = vpop.permute.xlu0 %1233
      %1235 = vrot.lane.b32.xlu0 %v1230, 96
      %v1236 = vpop.permute.xlu0 %1235
      %v1237 = vsel %vm751, %v1232, %v1234
      %v1238 = vsel %vm751, %v1234, %v1236
      %v1241 = vrot.slane %v1041, 2
      %v1242 = vrot.slane %v1042, 2
      %1243 = vrot.lane.b32.xlu0 %v1146, 95
      %v1244 = vpop.permute.xlu0 %1243
      %1245 = vrot.lane.b32.xlu0 %v1241, 95
      %v1246 = vpop.permute.xlu0 %1245
      %1247 = vrot.lane.b32.xlu0 %v1242, 95
      %v1248 = vpop.permute.xlu0 %1247
      %v1249 = vsel %vm760, %v1244, %v1246
      %v1250 = vsel %vm760, %v1246, %v1248
      %1251 = vrot.lane.b32.xlu0 %v605, 94
      %v1252 = vpop.permute.xlu0 %1251
      %1253 = vrot.lane.b32.xlu0 %v606, 94
      %v1254 = vpop.permute.xlu0 %1253
      %v1255 = vsel %vm771, %v1252, %v1254
      %v1258 = vrot.slane %v1043, 6
      %v1259 = vrot.slane %v1044, 6
      %1260 = vrot.lane.b32.xlu0 %v1258, 93
      %v1261 = vpop.permute.xlu0 %1260
      %1262 = vrot.lane.b32.xlu0 %v1259, 93
      %v1263 = vpop.permute.xlu0 %1262
      %1264 = vrot.lane.b32.xlu0 %v1121, 93
      %v1265 = vpop.permute.xlu0 %1264
      %vm1266 = vcmask 760832
      %v1267 = vsel %vm1266, %v1261, %v1263
      %v1268 = vsel %vm1266, %v1263, %v1265
      %v1271 = vrot.slane %v1053, 4
      %v1272 = vrot.slane %v1054, 4
      %1273 = vrot.lane.b32.xlu0 %v1271, 92
      %v1274 = vpop.permute.xlu0 %1273
      %1275 = vrot.lane.b32.xlu0 %v1272, 92
      %v1276 = vpop.permute.xlu0 %1275
      %1277 = vrot.lane.b32.xlu0 %v690, 92
      %v1278 = vpop.permute.xlu0 %1277
      %vm1279 = vcmask 752640
      %v1280 = vsel %vm1279, %v1274, %v1276
      %v1281 = vsel %vm1279, %v1276, %v1278
      %v1284 = vrot.slane %v1063, 2
      %v1285 = vrot.slane %v1064, 2
      %1286 = vrot.lane.b32.xlu0 %v1284, 80
      %v1287 = vpop.permute.xlu0 %1286
      %1288 = vrot.lane.b32.xlu0 %v1285, 80
      %v1289 = vpop.permute.xlu0 %1288
      %1290 = vrot.lane.b32.xlu0 %v1146, 80
      %v1291 = vpop.permute.xlu0 %1290
      %vm1292 = vcmask 654336
      %v1293 = vsel %vm1292, %v1287, %v1289
      %v1294 = vsel %vm1292, %v1289, %v1291
      %vm1295 = vcmask 1041408
      %v1297 = vsel %vm1295, 0, %v1130
      %v1300 = vsel %vm1295, %v964, %v1131
      %v1303 = vsel %vm1295, %v965, %v1129
      %v1305 = vsel %vm774, %v1297, %v1142
      %v1307 = vsel %vm774, %v1300, %v1143
      %v1309 = vsel %vm774, %v1303, %v1141
      %vm1310 = vcmask 1045504
      %v1312 = vsel %vm1310, %v1305, %v1156
      %v1314 = vsel %vm1310, %v1307, %v1157
      %v1316 = vsel %vm1310, %v1309, %v1154
      %v1319 = vsel %vm1295, %v1167, %v1179
      %v1322 = vsel %vm1295, %v1168, %v1180
      %v1325 = vsel %vm1295, %v1165, %v1178
      %v1327 = vsel %vm774, %v1319, %v1191
      %v1329 = vsel %vm774, %v1322, %v1192
      %v1331 = vsel %vm774, %v1325, %v1190
      %v1333 = vsel %vm1310, %v1327, %v1201
      %v1335 = vsel %vm1310, %v1329, %v1202
      %v1337 = vsel %vm1310, %v1331, %v1200
      %v1340 = vsel %vm1295, %v1212, %v1225
      %v1343 = vsel %vm1295, %v1213, %v1226
      %v1346 = vsel %vm1295, %v1210, %v1223
      %v1348 = vsel %vm774, %v1340, %v1237
      %v1350 = vsel %vm774, %v1343, %v1238
      %v1352 = vsel %vm774, %v1346, %v1236
      %v1354 = vsel %vm1310, %v1348, %v1249
      %v1356 = vsel %vm1310, %v1350, %v1250
      %v1358 = vsel %vm1310, %v1352, %v1248
      %v1361 = vsel %vm1295, %v1252, %v1261
      %v1364 = vsel %vm1295, %v1255, %v1267
      %v1367 = vsel %vm1295, %v1254, %v1268
      %v1369 = vsel %vm774, %v1361, %v1274
      %v1371 = vsel %vm774, %v1364, %v1280
      %v1373 = vsel %vm774, %v1367, %v1281
      %v1375 = vsel %vm1310, %v1369, %v1287
      %v1377 = vsel %vm1310, %v1371, %v1293
      %v1379 = vsel %vm1310, %v1373, %v1294
      %v1380 = vrot.slane %v605, 6
      %v1381 = vrot.slane %v606, 6
      %1382 = vrot.lane.b32.xlu0 %v1380, 127
      %v1383 = vpop.permute.xlu0 %1382
      %1384 = vrot.lane.b32.xlu0 %v1381, 127
      %v1385 = vpop.permute.xlu0 %1384
      %v1386 = vsel %vm651, %v1383, %v1385
      %v1387 = vsel %vm651, %v1385, %v1125
      %v1390 = vrot.slane %v1067, 4
      %v1391 = vrot.slane %v1068, 4
      %1392 = vrot.lane.b32.xlu0 %v1390, 126
      %v1393 = vpop.permute.xlu0 %1392
      %1394 = vrot.lane.b32.xlu0 %v1391, 126
      %v1395 = vpop.permute.xlu0 %1394
      %v1396 = vsel %vm709, %v1393, %v1395
      %v1397 = vsel %vm709, %v1395, %v1137
      %v1400 = vrot.slane %v1077, 2
      %v1401 = vrot.slane %v1078, 2
      %1402 = vrot.lane.b32.xlu0 %v1400, 125
      %v1403 = vpop.permute.xlu0 %1402
      %1404 = vrot.lane.b32.xlu0 %v1401, 125
      %v1405 = vpop.permute.xlu0 %1404
      %v1406 = vsel %vm1155, %v1403, %v1405
      %v1407 = vsel %vm1155, %v1405, %v1150
      %1410 = vrot.lane.b32.xlu0 %v1087, 113
      %v1411 = vpop.permute.xlu0 %1410
      %1412 = vrot.lane.b32.xlu0 %v1088, 113
      %v1413 = vpop.permute.xlu0 %1412
      %1414 = vrot.lane.b32.xlu0 0, 113
      %v1415 = vpop.permute.xlu0 %1414
      %v1416 = vsel %vm641, %v1411, %v1413
      %v1417 = vsel %vm641, %v1413, %v1415
      %v1420 = vrot.slane %v1097, 6
      %v1421 = vrot.slane %v1098, 6
      %1422 = vrot.lane.b32.xlu0 %v1420, 112
      %v1423 = vpop.permute.xlu0 %1422
      %1424 = vrot.lane.b32.xlu0 %v1421, 112
      %v1425 = vpop.permute.xlu0 %1424
      %v1426 = vsel %vm722, %v1423, %v1425
      %v1427 = vsel %vm722, %v1425, %v1174
      %1428 = vrot.lane.b32.xlu0 %v1134, 111
      %v1429 = vpop.permute.xlu0 %1428
      %1430 = vrot.lane.b32.xlu0 %v1135, 111
      %v1431 = vpop.permute.xlu0 %1430
      %v1432 = vsel %vm621, %v1429, %v1431
      %v1433 = vsel %vm621, %v1431, %v1186
      %v1436 = vrot.slane %v1107, 2
      %v1437 = vrot.slane %v1108, 2
      %1438 = vrot.lane.b32.xlu0 %v1436, 110
      %v1439 = vpop.permute.xlu0 %1438
      %1440 = vrot.lane.b32.xlu0 %v1437, 110
      %v1441 = vpop.permute.xlu0 %1440
      %v1442 = vsel %vm740, %v1439, %v1441
      %v1443 = vsel %vm740, %v1441, %v1196
      %1446 = vrot.lane.b32.xlu0 %v1117, 109
      %v1447 = vpop.permute.xlu0 %1446
      %1448 = vrot.lane.b32.xlu0 %v1118, 109
      %v1449 = vpop.permute.xlu0 %1448
      %v1450 = vsel %vm1211, %v1447, %v1449
      %v1451 = vsel %vm1211, %v1449, %v1206
      %v1454 = vsel %vm1295, %v1065, %v1386
      %v1457 = vsel %vm1295, %v1066, %v1387
      %v1459 = vsel %vm1295, 0, %v1125
      %v1461 = vsel %vm774, %v1454, %v1396
      %v1463 = vsel %vm774, %v1457, %v1397
      %v1465 = vsel %vm774, %v1459, %v1137
      %v1467 = vsel %vm1310, %v1461, %v1406
      %v1469 = vsel %vm1310, %v1463, %v1407
      %v1471 = vsel %vm1310, %v1465, %v1150
      %v1474 = vsel %vm1295, %v1416, %v1426
      %v1477 = vsel %vm1295, %v1417, %v1427
      %v1480 = vsel %vm1295, %v1415, %v1174
      %v1482 = vsel %vm774, %v1474, %v1432
      %v1484 = vsel %vm774, %v1477, %v1433
      %v1486 = vsel %vm774, %v1480, %v1186
      %v1488 = vsel %vm1310, %v1482, %v1442
      %v1490 = vsel %vm1310, %v1484, %v1443
      %v1492 = vsel %vm1310, %v1486, %v1196
      %1499 = vrot.lane.b32.xlu0 %v1467, 79
      %v1500 = vpop.permute.xlu0 %1499
      %1501 = vrot.lane.b32.xlu0 %v1469, 79
      %v1502 = vpop.permute.xlu0 %1501
      %1503 = vrot.lane.b32.xlu0 %v1471, 79
      %v1504 = vpop.permute.xlu0 %1503
      %1505 = vrot.lane.b32.xlu0 %v1488, 79
      %v1506 = vpop.permute.xlu0 %1505
      %1507 = vrot.lane.b32.xlu0 %v1490, 79
      %v1508 = vpop.permute.xlu0 %1507
      %1509 = vrot.lane.b32.xlu0 %v1492, 79
      %v1510 = vpop.permute.xlu0 %1509
      %1511 = vrot.lane.b32.xlu0 %v1450, 79
      %v1512 = vpop.permute.xlu0 %1511
      %1513 = vrot.lane.b32.xlu0 %v1451, 79
      %v1514 = vpop.permute.xlu0 %1513
      %1515 = vrot.lane.b32.xlu0 %v1206, 79
      %v1516 = vpop.permute.xlu0 %1515
      %vm1517 = vcmask 646144
      %v1518 = vsel %vm1517, %v1500, %v1502
      %v1519 = vsel %vm1517, %v1502, %v1504
      %v1520 = vsel %vm1517, %v1506, %v1508
      %v1521 = vsel %vm1517, %v1508, %v1510
      %v1522 = vsel %vm1517, %v1512, %v1514
      %v1523 = vsel %vm1517, %v1514, %v1516
      %1525 = vset.pattern.permute.xlu0 0
      %1526 = vperm.xlu0 %1525, %v354
      %v1527 = vpop.permute.xlu0 %1526
      %1541 = vrot.lane.b32.xlu0 %v1312, 34
      %v1542 = vpop.permute.xlu0 %1541
      %1543 = vrot.lane.b32.xlu0 %v1314, 34
      %v1544 = vpop.permute.xlu0 %1543
      %1545 = vrot.lane.b32.xlu0 %v1316, 34
      %v1546 = vpop.permute.xlu0 %1545
      %1547 = vrot.lane.b32.xlu0 %v1333, 34
      %v1548 = vpop.permute.xlu0 %1547
      %1549 = vrot.lane.b32.xlu0 %v1335, 34
      %v1550 = vpop.permute.xlu0 %1549
      %1551 = vrot.lane.b32.xlu0 %v1337, 34
      %v1552 = vpop.permute.xlu0 %1551
      %1553 = vrot.lane.b32.xlu0 %v1354, 34
      %v1554 = vpop.permute.xlu0 %1553
      %1555 = vrot.lane.b32.xlu0 %v1356, 34
      %v1556 = vpop.permute.xlu0 %1555
      %1557 = vrot.lane.b32.xlu0 %v1358, 34
      %v1558 = vpop.permute.xlu0 %1557
      %1559 = vrot.lane.b32.xlu0 %v1375, 34
      %v1560 = vpop.permute.xlu0 %1559
      %1561 = vrot.lane.b32.xlu0 %v1377, 34
      %v1562 = vpop.permute.xlu0 %1561
      %1563 = vrot.lane.b32.xlu0 %v1379, 34
      %v1564 = vpop.permute.xlu0 %1563
      %1565 = vrot.lane.b32.xlu0 %v1500, 34
      %v1566 = vpop.permute.xlu0 %1565
      %1567 = vrot.lane.b32.xlu0 %v1518, 34
      %v1568 = vpop.permute.xlu0 %1567
      %1569 = vrot.lane.b32.xlu0 %v1519, 34
      %v1570 = vpop.permute.xlu0 %1569
      %1571 = vrot.lane.b32.xlu0 %v1506, 34
      %v1572 = vpop.permute.xlu0 %1571
      %1573 = vrot.lane.b32.xlu0 %v1520, 34
      %v1574 = vpop.permute.xlu0 %1573
      %1575 = vrot.lane.b32.xlu0 %v1521, 34
      %v1576 = vpop.permute.xlu0 %1575
      %1577 = vrot.lane.b32.xlu0 %v1512, 34
      %v1578 = vpop.permute.xlu0 %1577
      %1579 = vrot.lane.b32.xlu0 %v1522, 34
      %v1580 = vpop.permute.xlu0 %1579
      %1581 = vrot.lane.b32.xlu0 %v1523, 34
      %v1582 = vpop.permute.xlu0 %1581
      %v1583 = vsel %vm1113, %v1542, %v1544
      %v1584 = vsel %vm1113, %v1544, %v1546
      %v1585 = vsel %vm1113, %v1548, %v1550
      %v1586 = vsel %vm1113, %v1550, %v1552
      %v1587 = vsel %vm1113, %v1554, %v1556
      %v1588 = vsel %vm1113, %v1556, %v1558
      %v1589 = vsel %vm1113, %v1560, %v1562
      %v1590 = vsel %vm1113, %v1562, %v1564
      %v1591 = vsel %vm1113, %v1566, %v1568
      %v1592 = vsel %vm1113, %v1568, %v1570
      %v1593 = vsel %vm1113, %v1572, %v1574
      %v1594 = vsel %vm1113, %v1574, %v1576
      %v1595 = vsel %vm1113, %v1578, %v1580
      %v1596 = vsel %vm1113, %v1580, %v1582
      %vm1609 = vcmask 818176
      %v1611 = vsel %vm1609, %v353, 0
      %v1614 = vsel %vm1295, %v1595, 0
      %v1617 = vsel %vm1295, %v1596, 0
      %1619 = vmatprep.subr.bf16.mxu0 0
      %1620 = vmatpush1.bf16.msra.mxu0 0
      %1621 = vmatprep.subr.bf16.mxu0 %v1617
      %1622 = vmatpush1.bf16.msra.mxu0 %v1614
      %1623 = vmatprep.subr.bf16.mxu0 %v1594
      %1624 = vmatpush1.bf16.msra.mxu0 %v1593
      %1625 = vmatprep.subr.bf16.mxu0 %v1592
      %1626 = vmatpush1.bf16.msra.mxu0 %v1591
      %1627 = vmatprep.subr.bf16.mxu0 %v1590
      %1628 = vmatpush1.bf16.msra.mxu0 %v1589
      %1629 = vmatprep.subr.bf16.mxu0 %v1588
      %1630 = vmatpush1.bf16.msra.mxu0 %v1587
      %1631 = vmatprep.subr.bf16.mxu0 %v1586
      %1632 = vmatpush1.bf16.msra.mxu0 %v1585
      %1633 = vmatprep.subr.bf16.mxu0 %v1584
      %1634 = vmatpush1.bf16.msra.mxu0 %v1583
      %1635 = vmatprep.subr.bf16.mxu0 0
      %1636 = vmatpush2.bf16.msra.mxu0 0
      %1637 = vmatprep.subr.bf16.mxu0 0
      %1638 = vmatpush2.bf16.msra.mxu0 0
      %1639 = vmatprep.subr.bf16.mxu0 0
      %1640 = vmatpush2.bf16.msra.mxu0 0
      %1641 = vmatprep.subr.bf16.mxu0 0
      %1642 = vmatpush2.bf16.msra.mxu0 0
      %1643 = vmatprep.subr.bf16.mxu0 0
      %1644 = vmatpush2.bf16.msra.mxu0 0
      %1645 = vmatprep.subr.bf16.mxu0 0
      %1646 = vmatpush2.bf16.msra.mxu0 0
      %1647 = vmatprep.subr.bf16.mxu0 0
      %1648 = vmatpush2.bf16.msra.mxu0 0
      %1649 = vmatprep.subr.bf16.mxu0 0
      %1650 = vmatpush2.bf16.msra.mxu0 0
      %1651 = vmatprep.mubr.bf16.mxu0 0
      %1652 = vmatmul.mubr.bf16.gmra.mxu0 %v1611
      %v1653 = vpop.f32.mrf.mxu0
      %v1654 = vadd.f32 %v1527, %v1653
      %v1655 = vpop.f32.mrf.mxu0
      %v1656 = vadd.f32 %v1527, %v1655
      %v1657 = vpop.f32.mrf.mxu0
      %v1658 = vpop.f32.mrf.mxu0
      %1659 = vdwg.mxu0
      %v1660 = vmax.f32 %v1654, 0.0
      %v1661 = vmax.f32 %v1656, 0.0
      %v1666 = vrot.slane %v599, 4
      %v1667 = vrot.slane %v601, 4
      %v1668 = vsel %vm774, %v1666, %v1667
      %v1669 = vrot.slane %v600, 4
      %v1670 = vrot.slane %v602, 4
      %v1671 = vsel %vm774, %v1669, %v1670
      %1674 = vst [vmem:[%s278] sm:$0xff] %v595
      %1675 = vst [vmem:[%s278 + $0x8] sm:$0xff] %v596
      %1676 = vst [vmem:[%s278 + $0x10] sm:$0xff] %v939
      %1677 = vst [vmem:[%s278 + $0x18] sm:$0xff] %v940
      %1678 = vst [vmem:[%s278 + $0x20] sm:$0xff] %v941
      %1679 = vst [vmem:[%s278 + $0x28] sm:$0xff] %v942
      %1680 = vst [vmem:[%s278 + $0x30] sm:$0xff] %v1660
      %1681 = vst [vmem:[%s278 + $0x38] sm:$0xff] %v1661
      %1682 = vst [vmem:[%s278 + $0x40] sm:$0xff] %v1668
      %1683 = vst [vmem:[%s278 + $0x48] sm:$0xff] %v1671
      %p1684 = scmp.lt.s32.totalorder %s18, 1
      %s1685 = scalar_select %p1684, %s18, 1
      %s1686 = smul.addr %s1685, 10
      %s1687 = smul.addr %s1686, 8
      %s1688 = scalar_lea.vmem %s7, %s1687
      // Predicated region
      $region49: #{block_forward.1} parent=47 // pred_check
        %p1689 = pneg %p188
      $region50: #{block_forward.1} parent=47 // pred_check_branch
        %1691 = sbr.rel (%p1689) target = $region52
      $region51: #{block_forward.1} parent=47 // pred_region
        _
      $region52: #{block_forward.1} parent=47 // pred_fallthru
        _
    $region48: #{block_forward.1} parent=5 // pred_fallthru
      _
    %p1692 = scmp.le.s32.totalorder 2, %s13
    // Predicated region
    $region53: #{block_forward.1} parent=5 // pred_check
      %p1693 = pneg %p1692
    $region54: #{block_forward.1} parent=5 // pred_check_branch
      %1695 = sbr.rel (%p1693) target = $region56
    $region55: #{block_forward.1} parent=5 // pred_region
      %s1696 = ssub.s32 %s13, 2
      // Predicated region
      $region57: #{block_forward.1} parent=55 // pred_check
        %p1697 = pneg %p194
      $region58: #{block_forward.1} parent=55 // pred_check_branch
        %1699 = sbr.rel (%p1697) target = $region60
      $region59: #{block_forward.1} parent=55 // pred_region
        %p1700 = scmp.lt.s32.totalorder %s19, 1
        %s1701 = scalar_select %p1700, %s19, 1
        %s1702 = smul.addr %s1701, 10
        %s1703 = smul.addr %s1702, 8
        %s1704 = scalar_lea.vmem %s7, %s1703
      $region60: #{block_forward.1} parent=55 // pred_fallthru
        _
    $region56: #{block_forward.1} parent=5 // pred_fallthru
      _
  $region6: #{block_forward.1} parent=0 // loop_footer
    %s17 = sadd.s32 1, %s13
  $region7: #{block_forward.1} parent=0 // loop_footer_branch
    %12 = sbr.rel target = $region3
  $region8: #{block_forward.1} parent=0 // loop_exit
    _

</llo_original>
